<compile_context>
chip_gen: v7x
topology: tpu7x:2x2x1
jax: 0.10.0
libtpu: 0.0.40
codegen_flags: <defaults>
</compile_context>

<pallas_src>
import jax
import jax.numpy as jnp
from jax import lax
from jax.experimental import pallas as pl
from jax.experimental.pallas import tpu as pltpu


def resnet_block_kernel(x_ref, noise_ref, pup_ref, pdn_ref,
                        w1u_ref, w1c_ref, w1d_ref, b1_ref,
                        w2u_ref, w2c_ref, w2d_ref, b2_ref,
                        wr_ref, br_ref, o_ref):
    """Fused ResnetBlock forward.  All activations are (B*H, W*C) f32."""
    f32 = jnp.float32
    x = x_ref[...]                                                  # (BH, W*Cin)

    # ---- block1: Swish -> Conv3x3 (dy via row-shift matmuls, dx inside band weights)
    sx = x * jax.nn.sigmoid(x)
    up = jnp.dot(pup_ref[...], sx, preferred_element_type=f32)      # row y-1 (zero at y==0)
    dn = jnp.dot(pdn_ref[...], sx, preferred_element_type=f32)      # row y+1 (zero at y==H-1)
    h = (jnp.dot(up, w1u_ref[...], preferred_element_type=f32)
         + jnp.dot(sx, w1c_ref[...], preferred_element_type=f32)
         + jnp.dot(dn, w1d_ref[...], preferred_element_type=f32)
         + b1_ref[...])                                             # (BH, W*Cout)

    # ---- FeatureWiseAffine (use_affine_level=False): add hoisted Linear(temb)
    h = h + noise_ref[...]
    # TODO(synk): use_affine_level=True path ((1+gamma)*x+beta) not exercised by module defaults.

    # ---- block2: Swish -> Conv3x3
    sh = h * jax.nn.sigmoid(h)
    up2 = jnp.dot(pup_ref[...], sh, preferred_element_type=f32)
    dn2 = jnp.dot(pdn_ref[...], sh, preferred_element_type=f32)
    h2 = (jnp.dot(up2, w2u_ref[...], preferred_element_type=f32)
          + jnp.dot(sh, w2c_ref[...], preferred_element_type=f32)
          + jnp.dot(dn2, w2d_ref[...], preferred_element_type=f32)
          + b2_ref[...])

    # ---- residual 1x1 conv (block-diagonal matmul), fused into the final store
    res = jnp.dot(x, wr_ref[...], preferred_element_type=f32) + br_ref[...]
    o_ref[...] = h2 + res


def _band_weights(w, W):
    """w: (3, 3, Cin, Cout) HWIO -> three (W*Cin, W*Cout) banded matrices, one per ky.

    mats[ky][xi*Cin + c, xo*Cout + o] = w[ky, xi - xo + 1, c, o] (0 outside the band),
    i.e. the dx taps and the x-direction zero padding are encoded in the band.
    """
    kh, kw, Cin, Cout = w.shape
    xi = jnp.arange(W)[:, None]
    xo = jnp.arange(W)[None, :]
    kx = xi - xo + 1                                                 # (W, W)
    valid = (kx >= 0) & (kx < kw)
    kx_c = jnp.clip(kx, 0, kw - 1)
    mats = []
    for ky in range(kh):
        m = jnp.where(valid[:, :, None, None], w[ky][kx_c], 0.0)     # (W, W, Cin, Cout)
        mats.append(m.transpose(0, 2, 1, 3).reshape(W * Cin, W * Cout))
    return mats


def _row_shift_matrix(B, H, dy):
    """(B*H, B*H) matrix P with (P @ a)[r] = a[r + dy] within the same image, else 0."""
    BH = B * H
    r = jnp.arange(BH)
    rin = r + dy
    rin_c = jnp.clip(rin, 0, BH - 1)
    ok = (rin >= 0) & (rin < BH) & ((rin_c // H) == (r // H))
    P = jnp.zeros((BH, BH), jnp.float32)
    return P.at[r, rin_c].set(jnp.where(ok, 1.0, 0.0))


def resnet_block_forward(x_nhwc, temb, params):
    B, H, W, Cin = x_nhwc.shape
    Cout = params['w1'].shape[-1]
    BH = B * H
    KC_in, KC_out = W * Cin, W * Cout

    # ---- wrapper-side prep (tiny XLA ops; keeps the kernel lane-dense) ----
    x2d = x_nhwc.reshape(BH, KC_in)                                  # free reshape

    # FeatureWiseAffine linear hoisted out of the kernel, pre-broadcast to (BH, W*Cout).
    noise = jnp.dot(temb, params['wn'], precision=lax.Precision.HIGHEST) + params['bn']
    noise_map = jnp.tile(jnp.repeat(noise, H, axis=0), (1, W))

    p_up = _row_shift_matrix(B, H, -1)        # picks row y-1 (ky = 0 tap)
    p_dn = _row_shift_matrix(B, H, +1)        # picks row y+1 (ky = 2 tap)

    w1u, w1c, w1d = _band_weights(params['w1'], W)
    w2u, w2c, w2d = _band_weights(params['w2'], W)
    wr = jnp.einsum('xy,co->xcyo', jnp.eye(W, dtype=jnp.float32),
                    params['wr']).reshape(KC_in, KC_out)             # block-diag 1x1 conv

    b1 = jnp.tile(params['b1'], (1, W))                              # (1, W*Cout)
    b2 = jnp.tile(params['b2'], (1, W))
    br = jnp.tile(params['br'], (1, W))

    operands = (x2d, noise_map, p_up, p_dn,
                w1u, w1c, w1d, b1, w2u, w2c, w2d, b2, wr, br)

    flops = (2 * 2 * BH * BH * (KC_in + KC_out)       # row-shift matmuls (2 per conv)
             + 2 * 3 * BH * KC_in * KC_out            # block1 band matmuls
             + 2 * 3 * BH * KC_out * KC_out           # block2 band matmuls
             + 2 * BH * KC_in * KC_out)               # residual 1x1
    bytes_accessed = 4 * (sum(int(o.size) for o in operands) + BH * KC_out)
    cost = pl.CostEstimate(flops=flops,
                           transcendentals=BH * (KC_in + KC_out),
                           bytes_accessed=bytes_accessed)

    vmem = pl.BlockSpec(memory_space=pltpu.MemorySpace.VMEM)
    out2d = pl.pallas_call(
        resnet_block_kernel,
        out_shape=jax.ShapeDtypeStruct((BH, KC_out), jnp.float32),
        in_specs=[vmem] * len(operands),
        out_specs=vmem,
        cost_estimate=cost,
    )(*operands)

    return out2d.reshape(B, H, W, Cout)


def ref_forward(x_nhwc, temb, p):
    """Pure-JAX reference matching PyTorch semantics (NHWC)."""
    dn = ('NHWC', 'HWIO', 'NHWC')
    hi = lax.Precision.HIGHEST
    sx = x_nhwc * jax.nn.sigmoid(x_nhwc)
    h1 = lax.conv_general_dilated(sx, p['w1'], (1, 1), 'SAME',
                                  dimension_numbers=dn, precision=hi) + p['b1'][0]
    noise = jnp.dot(temb, p['wn'], precision=hi) + p['bn'][0]
    h2 = h1 + noise[:, None, None, :]
    sh2 = h2 * jax.nn.sigmoid(h2)
    h3 = lax.conv_general_dilated(sh2, p['w2'], (1, 1), 'SAME',
                                  dimension_numbers=dn, precision=hi) + p['b2'][0]
    res = jnp.einsum('bhwc,co->bhwo', x_nhwc, p['wr'], precision=hi) + p['br'][0]
    return h3 + res


if __name__ == "__main__":
    B, Cin, Cout, H, W, Demb = 2, 4, 8, 16, 16, 32   # dim=4, dim_out=8, noise_level_emb_dim=32

    key = jax.random.PRNGKey(0)
    ks = jax.random.split(key, 10)
    x_nchw = jax.random.normal(ks[0], (B, Cin, H, W), jnp.float32)    # PyTorch NCHW input
    time_emb = jax.random.normal(ks[1], (B, Demb), jnp.float32)

    params = {
        'w1': 0.1 * jax.random.normal(ks[2], (3, 3, Cin, Cout), jnp.float32),
        'b1': 0.1 * jax.random.normal(ks[3], (1, Cout), jnp.float32),
        'wn': 0.1 * jax.random.normal(ks[4], (Demb, Cout), jnp.float32),
        'bn': 0.1 * jax.random.normal(ks[5], (1, Cout), jnp.float32),
        'w2': 0.1 * jax.random.normal(ks[6], (3, 3, Cout, Cout), jnp.float32),
        'b2': 0.1 * jax.random.normal(ks[7], (1, Cout), jnp.float32),
        'wr': 0.1 * jax.random.normal(ks[8], (Cin, Cout), jnp.float32),
        'br': 0.1 * jax.random.normal(ks[9], (1, Cout), jnp.float32),
    }

    # NCHW -> NHWC for the kernel, back to NCHW at the end.
    x_nhwc = jnp.transpose(x_nchw, (0, 2, 3, 1))
    out_nhwc = jax.block_until_ready(resnet_block_forward(x_nhwc, time_emb, params))
    out_nchw = jnp.transpose(out_nhwc, (0, 3, 1, 2))

    ref_nchw = jnp.transpose(ref_forward(x_nhwc, time_emb, params), (0, 3, 1, 2))
    max_err = float(jnp.max(jnp.abs(out_nchw - ref_nchw)))
    assert out_nchw.shape == (B, Cout, H, W)
    assert jnp.allclose(out_nchw, ref_nchw, atol=2e-2, rtol=2e-2), f"max_err={max_err}"
    print("KERNEL_OK")
</pallas_src>

<mosaic_0001>
module attributes {stable_mosaic.version = 11 : i64} {
  func.func @resnet_block_kernel(%arg0: memref<32x64xf32, #tpu.memory_space<vmem>>, %arg1: memref<32x128xf32, #tpu.memory_space<vmem>>, %arg2: memref<32x32xf32, #tpu.memory_space<vmem>>, %arg3: memref<32x32xf32, #tpu.memory_space<vmem>>, %arg4: memref<64x128xf32, #tpu.memory_space<vmem>>, %arg5: memref<64x128xf32, #tpu.memory_space<vmem>>, %arg6: memref<64x128xf32, #tpu.memory_space<vmem>>, %arg7: memref<1x128xf32, #tpu.memory_space<vmem>>, %arg8: memref<128x128xf32, #tpu.memory_space<vmem>>, %arg9: memref<128x128xf32, #tpu.memory_space<vmem>>, %arg10: memref<128x128xf32, #tpu.memory_space<vmem>>, %arg11: memref<1x128xf32, #tpu.memory_space<vmem>>, %arg12: memref<64x128xf32, #tpu.memory_space<vmem>>, %arg13: memref<1x128xf32, #tpu.memory_space<vmem>>, %arg14: memref<32x128xf32, #tpu.memory_space<vmem>>) attributes {dimension_semantics = [], scalar_prefetch = 0 : i64, scratch_operands = 0 : i64, tpu.core_type = #tpu.core_type<tc>} {
    %c0 = arith.constant 0 : index
    %c0_0 = arith.constant 0 : index
    %0 = vector.load %arg0[%c0, %c0_0] : memref<32x64xf32, #tpu.memory_space<vmem>>, vector<32x64xf32>
    %1 = arith.negf %0 : vector<32x64xf32>
    %2 = math.exp %1 : vector<32x64xf32>
    %cst = arith.constant 1.000000e+00 : f32
    %3 = vector.broadcast %cst : f32 to vector<32x64xf32>
    %4 = arith.addf %3, %2 : vector<32x64xf32>
    %5 = arith.divf %3, %4 : vector<32x64xf32>
    %6 = arith.mulf %0, %5 : vector<32x64xf32>
    %c0_1 = arith.constant 0 : index
    %c0_2 = arith.constant 0 : index
    %7 = vector.load %arg2[%c0_1, %c0_2] : memref<32x32xf32, #tpu.memory_space<vmem>>, vector<32x32xf32>
    %cst_3 = arith.constant dense<0.000000e+00> : vector<32x64xf32>
    %8 = tpu.matmul %7, %6, %cst_3 {dimension_numbers = #tpu.dot_dimension_numbers<[1], [0], [0], [1], [0, 0, 1, 1], [], []>} : vector<32x32xf32>, vector<32x64xf32>, vector<32x64xf32> -> vector<32x64xf32>
    %c0_4 = arith.constant 0 : index
    %c0_5 = arith.constant 0 : index
    %9 = vector.load %arg3[%c0_4, %c0_5] : memref<32x32xf32, #tpu.memory_space<vmem>>, vector<32x32xf32>
    %cst_6 = arith.constant dense<0.000000e+00> : vector<32x64xf32>
    %10 = tpu.matmul %9, %6, %cst_6 {dimension_numbers = #tpu.dot_dimension_numbers<[1], [0], [0], [1], [0, 0, 1, 1], [], []>} : vector<32x32xf32>, vector<32x64xf32>, vector<32x64xf32> -> vector<32x64xf32>
    %c0_7 = arith.constant 0 : index
    %c0_8 = arith.constant 0 : index
    %11 = vector.load %arg4[%c0_7, %c0_8] : memref<64x128xf32, #tpu.memory_space<vmem>>, vector<64x128xf32>
    %cst_9 = arith.constant dense<0.000000e+00> : vector<32x128xf32>
    %12 = tpu.matmul %8, %11, %cst_9 {dimension_numbers = #tpu.dot_dimension_numbers<[1], [0], [0], [1], [0, 0, 1, 1], [], []>} : vector<32x64xf32>, vector<64x128xf32>, vector<32x128xf32> -> vector<32x128xf32>
    %c0_10 = arith.constant 0 : index
    %c0_11 = arith.constant 0 : index
    %13 = vector.load %arg5[%c0_10, %c0_11] : memref<64x128xf32, #tpu.memory_space<vmem>>, vector<64x128xf32>
    %cst_12 = arith.constant dense<0.000000e+00> : vector<32x128xf32>
    %14 = tpu.matmul %6, %13, %cst_12 {dimension_numbers = #tpu.dot_dimension_numbers<[1], [0], [0], [1], [0, 0, 1, 1], [], []>} : vector<32x64xf32>, vector<64x128xf32>, vector<32x128xf32> -> vector<32x128xf32>
    %15 = arith.addf %12, %14 : vector<32x128xf32>
    %c0_13 = arith.constant 0 : index
    %c0_14 = arith.constant 0 : index
    %16 = vector.load %arg6[%c0_13, %c0_14] : memref<64x128xf32, #tpu.memory_space<vmem>>, vector<64x128xf32>
    %cst_15 = arith.constant dense<0.000000e+00> : vector<32x128xf32>
    %17 = tpu.matmul %10, %16, %cst_15 {dimension_numbers = #tpu.dot_dimension_numbers<[1], [0], [0], [1], [0, 0, 1, 1], [], []>} : vector<32x64xf32>, vector<64x128xf32>, vector<32x128xf32> -> vector<32x128xf32>
    %18 = arith.addf %15, %17 : vector<32x128xf32>
    %c0_16 = arith.constant 0 : index
    %c0_17 = arith.constant 0 : index
    %19 = vector.load %arg7[%c0_16, %c0_17] : memref<1x128xf32, #tpu.memory_space<vmem>>, vector<1x128xf32>
    %20 = vector.broadcast %19 : vector<1x128xf32> to vector<32x128xf32>
    %21 = arith.addf %18, %20 : vector<32x128xf32>
    %c0_18 = arith.constant 0 : index
    %c0_19 = arith.constant 0 : index
    %22 = vector.load %arg1[%c0_18, %c0_19] : memref<32x128xf32, #tpu.memory_space<vmem>>, vector<32x128xf32>
    %23 = arith.addf %21, %22 : vector<32x128xf32>
    %24 = arith.negf %23 : vector<32x128xf32>
    %25 = math.exp %24 : vector<32x128xf32>
    %cst_20 = arith.constant 1.000000e+00 : f32
    %26 = vector.broadcast %cst_20 : f32 to vector<32x128xf32>
    %27 = arith.addf %26, %25 : vector<32x128xf32>
    %28 = arith.divf %26, %27 : vector<32x128xf32>
    %29 = arith.mulf %23, %28 : vector<32x128xf32>
    %c0_21 = arith.constant 0 : index
    %c0_22 = arith.constant 0 : index
    %30 = vector.load %arg2[%c0_21, %c0_22] : memref<32x32xf32, #tpu.memory_space<vmem>>, vector<32x32xf32>
    %cst_23 = arith.constant dense<0.000000e+00> : vector<32x128xf32>
    %31 = tpu.matmul %30, %29, %cst_23 {dimension_numbers = #tpu.dot_dimension_numbers<[1], [0], [0], [1], [0, 0, 1, 1], [], []>} : vector<32x32xf32>, vector<32x128xf32>, vector<32x128xf32> -> vector<32x128xf32>
    %c0_24 = arith.constant 0 : index
    %c0_25 = arith.constant 0 : index
    %32 = vector.load %arg3[%c0_24, %c0_25] : memref<32x32xf32, #tpu.memory_space<vmem>>, vector<32x32xf32>
    %cst_26 = arith.constant dense<0.000000e+00> : vector<32x128xf32>
    %33 = tpu.matmul %32, %29, %cst_26 {dimension_numbers = #tpu.dot_dimension_numbers<[1], [0], [0], [1], [0, 0, 1, 1], [], []>} : vector<32x32xf32>, vector<32x128xf32>, vector<32x128xf32> -> vector<32x128xf32>
    %c0_27 = arith.constant 0 : index
    %c0_28 = arith.constant 0 : index
    %34 = vector.load %arg8[%c0_27, %c0_28] : memref<128x128xf32, #tpu.memory_space<vmem>>, vector<128x128xf32>
    %cst_29 = arith.constant dense<0.000000e+00> : vector<32x128xf32>
    %35 = tpu.matmul %31, %34, %cst_29 {dimension_numbers = #tpu.dot_dimension_numbers<[1], [0], [0], [1], [0, 0, 1, 1], [], []>} : vector<32x128xf32>, vector<128x128xf32>, vector<32x128xf32> -> vector<32x128xf32>
    %c0_30 = arith.constant 0 : index
    %c0_31 = arith.constant 0 : index
    %36 = vector.load %arg9[%c0_30, %c0_31] : memref<128x128xf32, #tpu.memory_space<vmem>>, vector<128x128xf32>
    %cst_32 = arith.constant dense<0.000000e+00> : vector<32x128xf32>
    %37 = tpu.matmul %29, %36, %cst_32 {dimension_numbers = #tpu.dot_dimension_numbers<[1], [0], [0], [1], [0, 0, 1, 1], [], []>} : vector<32x128xf32>, vector<128x128xf32>, vector<32x128xf32> -> vector<32x128xf32>
    %38 = arith.addf %35, %37 : vector<32x128xf32>
    %c0_33 = arith.constant 0 : index
    %c0_34 = arith.constant 0 : index
    %39 = vector.load %arg10[%c0_33, %c0_34] : memref<128x128xf32, #tpu.memory_space<vmem>>, vector<128x128xf32>
    %cst_35 = arith.constant dense<0.000000e+00> : vector<32x128xf32>
    %40 = tpu.matmul %33, %39, %cst_35 {dimension_numbers = #tpu.dot_dimension_numbers<[1], [0], [0], [1], [0, 0, 1, 1], [], []>} : vector<32x128xf32>, vector<128x128xf32>, vector<32x128xf32> -> vector<32x128xf32>
    %41 = arith.addf %38, %40 : vector<32x128xf32>
    %c0_36 = arith.constant 0 : index
    %c0_37 = arith.constant 0 : index
    %42 = vector.load %arg11[%c0_36, %c0_37] : memref<1x128xf32, #tpu.memory_space<vmem>>, vector<1x128xf32>
    %43 = vector.broadcast %42 : vector<1x128xf32> to vector<32x128xf32>
    %44 = arith.addf %41, %43 : vector<32x128xf32>
    %c0_38 = arith.constant 0 : index
    %c0_39 = arith.constant 0 : index
    %45 = vector.load %arg12[%c0_38, %c0_39] : memref<64x128xf32, #tpu.memory_space<vmem>>, vector<64x128xf32>
    %cst_40 = arith.constant dense<0.000000e+00> : vector<32x128xf32>
    %46 = tpu.matmul %0, %45, %cst_40 {dimension_numbers = #tpu.dot_dimension_numbers<[1], [0], [0], [1], [0, 0, 1, 1], [], []>} : vector<32x64xf32>, vector<64x128xf32>, vector<32x128xf32> -> vector<32x128xf32>
    %c0_41 = arith.constant 0 : index
    %c0_42 = arith.constant 0 : index
    %47 = vector.load %arg13[%c0_41, %c0_42] : memref<1x128xf32, #tpu.memory_space<vmem>>, vector<1x128xf32>
    %48 = vector.broadcast %47 : vector<1x128xf32> to vector<32x128xf32>
    %49 = arith.addf %46, %48 : vector<32x128xf32>
    %50 = arith.addf %44, %49 : vector<32x128xf32>
    %c0_43 = arith.constant 0 : index
    %c0_44 = arith.constant 0 : index
    %51 = vector.load %arg14[%c0_43, %c0_44] : memref<32x128xf32, #tpu.memory_space<vmem>>, vector<32x128xf32>
    tpu.vector_store %arg14[%c0_43, %c0_44], %50 {strides = array<i32>} : memref<32x128xf32, #tpu.memory_space<vmem>>, vector<32x128xf32>,
    return
  }
}

</mosaic_0001>

<llo_original>
// kernel: tpu_custom_call.1
$region0: #{tpu_custom_call.1}
  #allocation0 [shape = 'u32[]', space=smem, size = 0x4, offset = 0x4, fixed_abs, tag = 'smem constant byte address 0x4 - core index']
  #allocation1 [shape = 'u32[144,128]{1,0:T(1,128)}', space=vmem, size = 0x12000, scoped, tag = 'internal scratch']
  %s0 = inlined_call_operand.hbm [shape: f32[32,64], index: 0, kind: input, shape index: {}]
  %s1 = inlined_call_operand.hbm [shape: f32[32,128], index: 1, kind: input, shape index: {}]
  %s2 = inlined_call_operand.hbm [shape: f32[32,32], index: 2, kind: input, shape index: {}]
  %s3 = inlined_call_operand.hbm [shape: f32[32,32], index: 3, kind: input, shape index: {}]
  %s4 = inlined_call_operand.hbm [shape: f32[64,128], index: 4, kind: input, shape index: {}]
  %s5 = inlined_call_operand.hbm [shape: f32[64,128], index: 5, kind: input, shape index: {}]
  %s6 = inlined_call_operand.hbm [shape: f32[64,128], index: 6, kind: input, shape index: {}]
  %s7 = inlined_call_operand.vmem [shape: f32[1,128], index: 7, kind: input, shape index: {}]
  %s8 = inlined_call_operand.hbm [shape: f32[128,128], index: 8, kind: input, shape index: {}]
  %s9 = inlined_call_operand.hbm [shape: f32[128,128], index: 9, kind: input, shape index: {}]
  %s10 = inlined_call_operand.hbm [shape: f32[128,128], index: 10, kind: input, shape index: {}]
  %s11 = inlined_call_operand.vmem [shape: f32[1,128], index: 11, kind: input, shape index: {}]
  %s12 = inlined_call_operand.hbm [shape: f32[64,128], index: 12, kind: input, shape index: {}]
  %s13 = inlined_call_operand.vmem [shape: f32[1,128], index: 13, kind: input, shape index: {}]
  %s14 = inlined_call_operand.hbm [shape: f32[32,128], index: 14, kind: output, shape index: {}]
  %s15 = sld [smem:[#allocation0]]
  $region110: #{tpu_custom_call.1} parent=0
    _
  %s17 = ssub.s32 1, %s15
  %s18 = scalar_select 0, %s17, %s15
  $region1: #{tpu_custom_call.1} parent=0
    #allocation2 [shape = 'u8[16384]{0}', space=vmem, size = 0x4000, scoped, tag = 'input window, operand 0, single buffered']
    #allocation3 [shape = 's32[1]{0}', space=sflag, size = 0x4, scoped, tag = 'scoped memory for tpu_custom_call.1']
    #allocation4 [shape = 's32[1]{0}', space=sflag, size = 0x4, scoped, tag = 'scoped memory for tpu_custom_call.1']
    #allocation5 [shape = 'u8[16384]{0}', space=vmem, size = 0x4000, scoped, tag = 'input window, operand 1, single buffered']
    #allocation6 [shape = 's32[1]{0}', space=sflag, size = 0x4, scoped, tag = 'scoped memory for tpu_custom_call.1']
    #allocation7 [shape = 'u8[16384]{0}', space=vmem, size = 0x4000, scoped, tag = 'input window, operand 2, single buffered']
    #allocation8 [shape = 'u8[16384]{0}', space=vmem, size = 0x4000, scoped, tag = 'input window, operand 3, single buffered']
    #allocation9 [shape = 's32[1]{0}', space=sflag, size = 0x4, scoped, tag = 'scoped memory for tpu_custom_call.1']
    #allocation10 [shape = 'u8[32768]{0}', space=vmem, size = 0x8000, scoped, tag = 'input window, operand 4, single buffered']
    #allocation11 [shape = 'u8[32768]{0}', space=vmem, size = 0x8000, scoped, tag = 'input window, operand 5, single buffered']
    #allocation12 [shape = 's32[1]{0}', space=sflag, size = 0x4, scoped, tag = 'scoped memory for tpu_custom_call.1']
    #allocation13 [shape = 'u8[32768]{0}', space=vmem, size = 0x8000, scoped, tag = 'input window, operand 6, single buffered']
    #allocation14 [shape = 'u8[65536]{0}', space=vmem, size = 0x10000, scoped, tag = 'input window, operand 8, single buffered']
    #allocation15 [shape = 's32[1]{0}', space=sflag, size = 0x4, scoped, tag = 'scoped memory for tpu_custom_call.1']
    #allocation16 [shape = 'u8[65536]{0}', space=vmem, size = 0x10000, scoped, tag = 'input window, operand 9, single buffered']
    #allocation17 [shape = 'u8[65536]{0}', space=vmem, size = 0x10000, scoped, tag = 'input window, operand 10, single buffered']
    #allocation18 [shape = 's32[1]{0}', space=sflag, size = 0x4, scoped, tag = 'scoped memory for tpu_custom_call.1']
    #allocation19 [shape = 'u8[32768]{0}', space=vmem, size = 0x8000, scoped, tag = 'input window, operand 12, single buffered']
    #allocation20 [shape = 'u8[16384]{0}', space=vmem, size = 0x4000, scoped, tag = 'output window, operand 0, single buffered']
    %19 = vsyncpa [#allocation3], 0
    %20 = vsyncpa [#allocation6], 0
    %21 = vsyncpa [#allocation9], 0
    %22 = vsyncpa [#allocation12], 0
    %23 = vsyncpa [#allocation15], 0
    %24 = vsyncpa [#allocation18], 0
    %25 = vsyncpa [#allocation4], 0
    // Predicated region
    $region2: #{tpu_custom_call.1} parent=1 // pred_check
      _
    $region3: #{tpu_custom_call.1} parent=1 // pred_check_branch
      %27 = sbr.rel (0) target = $region5
    $region4: #{tpu_custom_call.1} parent=1 // pred_region
      %s29 = ssub.s32 512, 512
      %30 = vsyncadd [#allocation3], %s29
      %s31 = sshll.u32 [#allocation2], 4
      %s32 = int_to_ptr.vmem [resolvable:$true] %s31
      %37 = dma.hbm_to_vmem [thread:$0]  %s0, 512, %s32, [#allocation3], 128, 128, 8
    $region5: #{tpu_custom_call.1} parent=1 // pred_fallthru
      _
    // Predicated region
    $region6: #{tpu_custom_call.1} parent=1 // pred_check
      _
    $region7: #{tpu_custom_call.1} parent=1 // pred_check_branch
      %39 = sbr.rel (0) target = $region9
    $region8: #{tpu_custom_call.1} parent=1 // pred_region
      %s41 = ssub.s32 512, 512
      %42 = vsyncadd [#allocation6], %s41
      %s43 = sshll.u32 [#allocation5], 4
      %s44 = int_to_ptr.vmem [resolvable:$true] %s43
      %49 = dma.hbm_to_vmem [thread:$0]  %s1, 512, %s44, [#allocation6], 128, 128, 8
    $region9: #{tpu_custom_call.1} parent=1 // pred_fallthru
      _
    // Predicated region
    $region10: #{tpu_custom_call.1} parent=1 // pred_check
      _
    $region11: #{tpu_custom_call.1} parent=1 // pred_check_branch
      %51 = sbr.rel (0) target = $region13
    $region12: #{tpu_custom_call.1} parent=1 // pred_region
      %s53 = ssub.s32 512, 512
      %54 = vsyncadd [#allocation6], %s53
      %s55 = sshll.u32 [#allocation7], 4
      %s56 = int_to_ptr.vmem [resolvable:$true] %s55
      %61 = dma.hbm_to_vmem [thread:$0]  %s2, 512, %s56, [#allocation6], 128, 128, 8
    $region13: #{tpu_custom_call.1} parent=1 // pred_fallthru
      _
    // Predicated region
    $region14: #{tpu_custom_call.1} parent=1 // pred_check
      _
    $region15: #{tpu_custom_call.1} parent=1 // pred_check_branch
      %63 = sbr.rel (0) target = $region17
    $region16: #{tpu_custom_call.1} parent=1 // pred_region
      %s65 = ssub.s32 512, 512
      %66 = vsyncadd [#allocation9], %s65
      %s67 = sshll.u32 [#allocation8], 4
      %s68 = int_to_ptr.vmem [resolvable:$true] %s67
      %73 = dma.hbm_to_vmem [thread:$0]  %s3, 512, %s68, [#allocation9], 128, 128, 8
    $region17: #{tpu_custom_call.1} parent=1 // pred_fallthru
      _
    // Predicated region
    $region18: #{tpu_custom_call.1} parent=1 // pred_check
      _
    $region19: #{tpu_custom_call.1} parent=1 // pred_check_branch
      %75 = sbr.rel (0) target = $region21
    $region20: #{tpu_custom_call.1} parent=1 // pred_region
      %s77 = ssub.s32 1024, 1024
      %78 = vsyncadd [#allocation9], %s77
      %s79 = sshll.u32 [#allocation10], 4
      %s80 = int_to_ptr.vmem [resolvable:$true] %s79
      %85 = dma.hbm_to_vmem [thread:$0]  %s4, 1024, %s80, [#allocation9], 128, 128, 8
    $region21: #{tpu_custom_call.1} parent=1 // pred_fallthru
      _
    // Predicated region
    $region22: #{tpu_custom_call.1} parent=1 // pred_check
      _
    $region23: #{tpu_custom_call.1} parent=1 // pred_check_branch
      %87 = sbr.rel (0) target = $region25
    $region24: #{tpu_custom_call.1} parent=1 // pred_region
      %s89 = ssub.s32 1024, 1024
      %90 = vsyncadd [#allocation12], %s89
      %s91 = sshll.u32 [#allocation11], 4
      %s92 = int_to_ptr.vmem [resolvable:$true] %s91
      %97 = dma.hbm_to_vmem [thread:$0]  %s5, 1024, %s92, [#allocation12], 128, 128, 8
    $region25: #{tpu_custom_call.1} parent=1 // pred_fallthru
      _
    // Predicated region
    $region26: #{tpu_custom_call.1} parent=1 // pred_check
      _
    $region27: #{tpu_custom_call.1} parent=1 // pred_check_branch
      %99 = sbr.rel (0) target = $region29
    $region28: #{tpu_custom_call.1} parent=1 // pred_region
      %s101 = ssub.s32 1024, 1024
      %102 = vsyncadd [#allocation12], %s101
      %s103 = sshll.u32 [#allocation13], 4
      %s104 = int_to_ptr.vmem [resolvable:$true] %s103
      %109 = dma.hbm_to_vmem [thread:$0]  %s6, 1024, %s104, [#allocation12], 128, 128, 8
    $region29: #{tpu_custom_call.1} parent=1 // pred_fallthru
      _
    // Predicated region
    $region30: #{tpu_custom_call.1} parent=1 // pred_check
      _
    $region31: #{tpu_custom_call.1} parent=1 // pred_check_branch
      %111 = sbr.rel (0) target = $region33
    $region32: #{tpu_custom_call.1} parent=1 // pred_region
      _
    $region33: #{tpu_custom_call.1} parent=1 // pred_fallthru
      _
    // Predicated region
    $region34: #{tpu_custom_call.1} parent=1 // pred_check
      _
    $region35: #{tpu_custom_call.1} parent=1 // pred_check_branch
      %113 = sbr.rel (0) target = $region37
    $region36: #{tpu_custom_call.1} parent=1 // pred_region
      %s115 = ssub.s32 2048, 2048
      %116 = vsyncadd [#allocation15], %s115
      %s117 = sshll.u32 [#allocation14], 4
      %s118 = int_to_ptr.vmem [resolvable:$true] %s117
      %123 = dma.hbm_to_vmem [thread:$0]  %s8, 2048, %s118, [#allocation15], 128, 128, 8
    $region37: #{tpu_custom_call.1} parent=1 // pred_fallthru
      _
    // Predicated region
    $region38: #{tpu_custom_call.1} parent=1 // pred_check
      _
    $region39: #{tpu_custom_call.1} parent=1 // pred_check_branch
      %125 = sbr.rel (0) target = $region41
    $region40: #{tpu_custom_call.1} parent=1 // pred_region
      %s127 = ssub.s32 2048, 2048
      %128 = vsyncadd [#allocation15], %s127
      %s129 = sshll.u32 [#allocation16], 4
      %s130 = int_to_ptr.vmem [resolvable:$true] %s129
      %135 = dma.hbm_to_vmem [thread:$0]  %s9, 2048, %s130, [#allocation15], 128, 128, 8
    $region41: #{tpu_custom_call.1} parent=1 // pred_fallthru
      _
    // Predicated region
    $region42: #{tpu_custom_call.1} parent=1 // pred_check
      _
    $region43: #{tpu_custom_call.1} parent=1 // pred_check_branch
      %137 = sbr.rel (0) target = $region45
    $region44: #{tpu_custom_call.1} parent=1 // pred_region
      %s139 = ssub.s32 2048, 2048
      %140 = vsyncadd [#allocation18], %s139
      %s141 = sshll.u32 [#allocation17], 4
      %s142 = int_to_ptr.vmem [resolvable:$true] %s141
      %147 = dma.hbm_to_vmem [thread:$0]  %s10, 2048, %s142, [#allocation18], 128, 128, 8
    $region45: #{tpu_custom_call.1} parent=1 // pred_fallthru
      _
    // Predicated region
    $region46: #{tpu_custom_call.1} parent=1 // pred_check
      _
    $region47: #{tpu_custom_call.1} parent=1 // pred_check_branch
      %149 = sbr.rel (0) target = $region49
    $region48: #{tpu_custom_call.1} parent=1 // pred_region
      _
    $region49: #{tpu_custom_call.1} parent=1 // pred_fallthru
      _
    // Predicated region
    $region50: #{tpu_custom_call.1} parent=1 // pred_check
      _
    $region51: #{tpu_custom_call.1} parent=1 // pred_check_branch
      %151 = sbr.rel (0) target = $region53
    $region52: #{tpu_custom_call.1} parent=1 // pred_region
      %s153 = ssub.s32 1024, 1024
      %154 = vsyncadd [#allocation18], %s153
      %s155 = sshll.u32 [#allocation19], 4
      %s156 = int_to_ptr.vmem [resolvable:$true] %s155
      %161 = dma.hbm_to_vmem [thread:$0]  %s12, 1024, %s156, [#allocation18], 128, 128, 8
    $region53: #{tpu_custom_call.1} parent=1 // pred_fallthru
      _
    // Predicated region
    $region54: #{tpu_custom_call.1} parent=1 // pred_check
      _
    $region55: #{tpu_custom_call.1} parent=1 // pred_check_branch
      %163 = sbr.rel (0) target = $region57
    $region56: #{tpu_custom_call.1} parent=1 // pred_region
      _
    $region57: #{tpu_custom_call.1} parent=1 // pred_fallthru
      _
    // Predicated region
    $region58: #{tpu_custom_call.1} parent=1 // pred_check
      _
    $region59: #{tpu_custom_call.1} parent=1 // pred_check_branch
      %165 = sbr.rel (0) target = $region61
    $region60: #{tpu_custom_call.1} parent=1 // pred_region
      %166 = dma.done [#allocation3], 512
    $region61: #{tpu_custom_call.1} parent=1 // pred_fallthru
      _
    // Predicated region
    $region62: #{tpu_custom_call.1} parent=1 // pred_check
      _
    $region63: #{tpu_custom_call.1} parent=1 // pred_check_branch
      %168 = sbr.rel (0) target = $region65
    $region64: #{tpu_custom_call.1} parent=1 // pred_region
      %169 = dma.done [#allocation6], 512
    $region65: #{tpu_custom_call.1} parent=1 // pred_fallthru
      _
    // Predicated region
    $region66: #{tpu_custom_call.1} parent=1 // pred_check
      _
    $region67: #{tpu_custom_call.1} parent=1 // pred_check_branch
      %171 = sbr.rel (0) target = $region69
    $region68: #{tpu_custom_call.1} parent=1 // pred_region
      %172 = dma.done [#allocation6], 512
    $region69: #{tpu_custom_call.1} parent=1 // pred_fallthru
      _
    // Predicated region
    $region70: #{tpu_custom_call.1} parent=1 // pred_check
      _
    $region71: #{tpu_custom_call.1} parent=1 // pred_check_branch
      %174 = sbr.rel (0) target = $region73
    $region72: #{tpu_custom_call.1} parent=1 // pred_region
      %175 = dma.done [#allocation9], 512
    $region73: #{tpu_custom_call.1} parent=1 // pred_fallthru
      _
    // Predicated region
    $region74: #{tpu_custom_call.1} parent=1 // pred_check
      _
    $region75: #{tpu_custom_call.1} parent=1 // pred_check_branch
      %177 = sbr.rel (0) target = $region77
    $region76: #{tpu_custom_call.1} parent=1 // pred_region
      %178 = dma.done [#allocation9], 1024
    $region77: #{tpu_custom_call.1} parent=1 // pred_fallthru
      _
    // Predicated region
    $region78: #{tpu_custom_call.1} parent=1 // pred_check
      _
    $region79: #{tpu_custom_call.1} parent=1 // pred_check_branch
      %180 = sbr.rel (0) target = $region81
    $region80: #{tpu_custom_call.1} parent=1 // pred_region
      %181 = dma.done [#allocation12], 1024
    $region81: #{tpu_custom_call.1} parent=1 // pred_fallthru
      _
    // Predicated region
    $region82: #{tpu_custom_call.1} parent=1 // pred_check
      _
    $region83: #{tpu_custom_call.1} parent=1 // pred_check_branch
      %183 = sbr.rel (0) target = $region85
    $region84: #{tpu_custom_call.1} parent=1 // pred_region
      %184 = dma.done [#allocation12], 1024
    $region85: #{tpu_custom_call.1} parent=1 // pred_fallthru
      _
    // Predicated region
    $region86: #{tpu_custom_call.1} parent=1 // pred_check
      _
    $region87: #{tpu_custom_call.1} parent=1 // pred_check_branch
      %186 = sbr.rel (0) target = $region89
    $region88: #{tpu_custom_call.1} parent=1 // pred_region
      %187 = dma.done [#allocation15], 2048
    $region89: #{tpu_custom_call.1} parent=1 // pred_fallthru
      _
    // Predicated region
    $region90: #{tpu_custom_call.1} parent=1 // pred_check
      _
    $region91: #{tpu_custom_call.1} parent=1 // pred_check_branch
      %189 = sbr.rel (0) target = $region93
    $region92: #{tpu_custom_call.1} parent=1 // pred_region
      %190 = dma.done [#allocation15], 2048
    $region93: #{tpu_custom_call.1} parent=1 // pred_fallthru
      _
    // Predicated region
    $region94: #{tpu_custom_call.1} parent=1 // pred_check
      _
    $region95: #{tpu_custom_call.1} parent=1 // pred_check_branch
      %192 = sbr.rel (0) target = $region97
    $region96: #{tpu_custom_call.1} parent=1 // pred_region
      %193 = dma.done [#allocation18], 2048
    $region97: #{tpu_custom_call.1} parent=1 // pred_fallthru
      _
    // Predicated region
    $region98: #{tpu_custom_call.1} parent=1 // pred_check
      _
    $region99: #{tpu_custom_call.1} parent=1 // pred_check_branch
      %195 = sbr.rel (0) target = $region101
    $region100: #{tpu_custom_call.1} parent=1 // pred_region
      %196 = dma.done [#allocation18], 1024
    $region101: #{tpu_custom_call.1} parent=1 // pred_fallthru
      _
    %v197 = vld [vmem:[#allocation2] sm:$0xff]
    %v198 = vld [vmem:[#allocation2 + $0x8] sm:$0xff]
    %v199 = vld [vmem:[#allocation2 + $0x10] sm:$0xff]
    %v200 = vld [vmem:[#allocation2 + $0x18] sm:$0xff]
    %v201 = vxor.u32 %v197, 2147483648
    %v202 = vxor.u32 %v198, 2147483648
    %v203 = vxor.u32 %v199, 2147483648
    %v204 = vxor.u32 %v200, 2147483648
    %v205 = vmul.f32 %v201, 1.442695
    %v206 = vpow.pop %v205
    %v207 = vmul.f32 %v202, 1.442695
    %v208 = vpow.pop %v207
    %v209 = vmul.f32 %v203, 1.442695
    %v210 = vpow.pop %v209
    %v211 = vmul.f32 %v204, 1.442695
    %v212 = vpow.pop %v211
    %v213 = vadd.f32 %v206, 1.0
    %v214 = vadd.f32 %v208, 1.0
    %v215 = vadd.f32 %v210, 1.0
    %v216 = vadd.f32 %v212, 1.0
    %v217 = vrcp.pop %v213
    %v218 = vmul.f32 1.0, %v217
    %v219 = vrcp.pop %v214
    %v220 = vmul.f32 1.0, %v219
    %v221 = vrcp.pop %v215
    %v222 = vmul.f32 1.0, %v221
    %v223 = vrcp.pop %v216
    %v224 = vmul.f32 1.0, %v223
    %v225 = vmul.f32 %v197, %v218
    %v226 = vmul.f32 %v198, %v220
    %v227 = vmul.f32 %v199, %v222
    %v228 = vmul.f32 %v200, %v224
    %v229 = vld [vmem:[#allocation7] sm:$0xff]
    %v230 = vld [vmem:[#allocation7 + $0x8] sm:$0xff]
    %v231 = vld [vmem:[#allocation7 + $0x10] sm:$0xff]
    %v232 = vld [vmem:[#allocation7 + $0x18] sm:$0xff]
    %vm233 = vcmask 261120
    %v235 = vsel %vm233, %v229, 0
    %v238 = vsel %vm233, %v230, 0
    %v241 = vsel %vm233, %v231, 0
    %v244 = vsel %vm233, %v232, 0
    %246 = vmatprep.subr.mxu0 0.0
    %247 = vmatpush1.msra.mxu0 %v225
    %248 = vmatprep.subr.mxu0 0.0
    %249 = vmatpush1.msra.mxu0 %v226
    %250 = vmatprep.subr.mxu0 0.0
    %251 = vmatpush1.msra.mxu0 %v227
    %252 = vmatprep.subr.mxu0 0.0
    %253 = vmatpush1.msra.mxu0 %v228
    %254 = vmatprep.subr.mxu0 0.0
    %255 = vmatpush1.msra.mxu0 0.0
    %256 = vmatprep.subr.mxu0 0.0
    %257 = vmatpush1.msra.mxu0 0.0
    %258 = vmatprep.subr.mxu0 0.0
    %259 = vmatpush1.msra.mxu0 0.0
    %260 = vmatprep.subr.mxu0 0.0
    %261 = vmatpush1.msra.mxu0 0.0
    %262 = vmatprep.subr.mxu0 0.0
    %263 = vmatpush1.msra.mxu0 0.0
    %264 = vmatprep.subr.mxu0 0.0
    %265 = vmatpush1.msra.mxu0 0.0
    %266 = vmatprep.subr.mxu0 0.0
    %267 = vmatpush1.msra.mxu0 0.0
    %268 = vmatprep.subr.mxu0 0.0
    %269 = vmatpush1.msra.mxu0 0.0
    %270 = vmatprep.subr.mxu0 0.0
    %271 = vmatpush1.msra.mxu0 0.0
    %272 = vmatprep.subr.mxu0 0.0
    %273 = vmatpush1.msra.mxu0 0.0
    %274 = vmatprep.subr.mxu0 0.0
    %275 = vmatpush1.msra.mxu0 0.0
    %276 = vmatprep.subr.mxu0 0.0
    %277 = vmatpush1.msra.mxu0 0.0
    %278 = vmatprep.subr.mxu0 0.0
    %279 = vmatpush1.msra.mxu0 0.0
    %280 = vmatprep.subr.mxu0 0.0
    %281 = vmatpush1.msra.mxu0 0.0
    %282 = vmatprep.subr.mxu0 0.0
    %283 = vmatpush1.msra.mxu0 0.0
    %284 = vmatprep.subr.mxu0 0.0
    %285 = vmatpush1.msra.mxu0 0.0
    %286 = vmatprep.subr.mxu0 0.0
    %287 = vmatpush1.msra.mxu0 0.0
    %288 = vmatprep.subr.mxu0 0.0
    %289 = vmatpush1.msra.mxu0 0.0
    %290 = vmatprep.subr.mxu0 0.0
    %291 = vmatpush1.msra.mxu0 0.0
    %292 = vmatprep.subr.mxu0 0.0
    %293 = vmatpush1.msra.mxu0 0.0
    %294 = vmatprep.subr.mxu0 0.0
    %295 = vmatpush1.msra.mxu0 0.0
    %296 = vmatprep.subr.mxu0 0.0
    %297 = vmatpush1.msra.mxu0 0.0
    %298 = vmatprep.subr.mxu0 0.0
    %299 = vmatpush1.msra.mxu0 0.0
    %300 = vmatprep.subr.mxu0 0.0
    %301 = vmatpush1.msra.mxu0 0.0
    %302 = vmatprep.subr.mxu0 0.0
    %303 = vmatpush1.msra.mxu0 0.0
    %304 = vmatprep.subr.mxu0 0.0
    %305 = vmatpush1.msra.mxu0 0.0
    %306 = vmatprep.subr.mxu0 0.0
    %307 = vmatpush1.msra.mxu0 0.0
    %308 = vmatprep.subr.mxu0 0.0
    %309 = vmatpush1.msra.mxu0 0.0
    %310 = vmatprep.mubr.f32.mxu0 0.0
    %311 = vmatmul.mubr.f32.gmra.mrb[0].mxu0 %v235
    %v312 = vpop.f32.mrb[0].mxu0
    %v313 = vadd.f32 0.0, %v312
    %v314 = vpop.f32.mrb[0].mxu0
    %315 = vmatprep.mubr.f32.mxu0 0.0
    %316 = vmatmul.mubr.f32.gmra.mrb[0].mxu0 %v238
    %v317 = vpop.f32.mrb[0].mxu0
    %v318 = vadd.f32 0.0, %v317
    %v319 = vpop.f32.mrb[0].mxu0
    %320 = vmatprep.mubr.f32.mxu0 0.0
    %321 = vmatmul.mubr.f32.gmra.mrb[0].mxu0 %v241
    %v322 = vpop.f32.mrb[0].mxu0
    %v323 = vadd.f32 0.0, %v322
    %v324 = vpop.f32.mrb[0].mxu0
    %325 = vmatprep.mubr.f32.mxu0 0.0
    %326 = vmatmul.mubr.f32.gmra.mrb[0].mxu0 %v244
    %v327 = vpop.f32.mrb[0].mxu0
    %v328 = vadd.f32 0.0, %v327
    %v329 = vpop.f32.mrb[0].mxu0
    %330 = vdwg.mxu0
    %v331 = vld [vmem:[#allocation8] sm:$0xff]
    %v332 = vld [vmem:[#allocation8 + $0x8] sm:$0xff]
    %v333 = vld [vmem:[#allocation8 + $0x10] sm:$0xff]
    %v334 = vld [vmem:[#allocation8 + $0x18] sm:$0xff]
    %v336 = vsel %vm233, %v331, 0
    %v339 = vsel %vm233, %v332, 0
    %v342 = vsel %vm233, %v333, 0
    %v345 = vsel %vm233, %v334, 0
    %347 = vmatprep.subr.mxu0 0.0
    %348 = vmatpush1.msra.mxu0 %v225
    %349 = vmatprep.subr.mxu0 0.0
    %350 = vmatpush1.msra.mxu0 %v226
    %351 = vmatprep.subr.mxu0 0.0
    %352 = vmatpush1.msra.mxu0 %v227
    %353 = vmatprep.subr.mxu0 0.0
    %354 = vmatpush1.msra.mxu0 %v228
    %355 = vmatprep.subr.mxu0 0.0
    %356 = vmatpush1.msra.mxu0 0.0
    %357 = vmatprep.subr.mxu0 0.0
    %358 = vmatpush1.msra.mxu0 0.0
    %359 = vmatprep.subr.mxu0 0.0
    %360 = vmatpush1.msra.mxu0 0.0
    %361 = vmatprep.subr.mxu0 0.0
    %362 = vmatpush1.msra.mxu0 0.0
    %363 = vmatprep.subr.mxu0 0.0
    %364 = vmatpush1.msra.mxu0 0.0
    %365 = vmatprep.subr.mxu0 0.0
    %366 = vmatpush1.msra.mxu0 0.0
    %367 = vmatprep.subr.mxu0 0.0
    %368 = vmatpush1.msra.mxu0 0.0
    %369 = vmatprep.subr.mxu0 0.0
    %370 = vmatpush1.msra.mxu0 0.0
    %371 = vmatprep.subr.mxu0 0.0
    %372 = vmatpush1.msra.mxu0 0.0
    %373 = vmatprep.subr.mxu0 0.0
    %374 = vmatpush1.msra.mxu0 0.0
    %375 = vmatprep.subr.mxu0 0.0
    %376 = vmatpush1.msra.mxu0 0.0
    %377 = vmatprep.subr.mxu0 0.0
    %378 = vmatpush1.msra.mxu0 0.0
    %379 = vmatprep.subr.mxu0 0.0
    %380 = vmatpush1.msra.mxu0 0.0
    %381 = vmatprep.subr.mxu0 0.0
    %382 = vmatpush1.msra.mxu0 0.0
    %383 = vmatprep.subr.mxu0 0.0
    %384 = vmatpush1.msra.mxu0 0.0
    %385 = vmatprep.subr.mxu0 0.0
    %386 = vmatpush1.msra.mxu0 0.0
    %387 = vmatprep.subr.mxu0 0.0
    %388 = vmatpush1.msra.mxu0 0.0
    %389 = vmatprep.subr.mxu0 0.0
    %390 = vmatpush1.msra.mxu0 0.0
    %391 = vmatprep.subr.mxu0 0.0
    %392 = vmatpush1.msra.mxu0 0.0
    %393 = vmatprep.subr.mxu0 0.0
    %394 = vmatpush1.msra.mxu0 0.0
    %395 = vmatprep.subr.mxu0 0.0
    %396 = vmatpush1.msra.mxu0 0.0
    %397 = vmatprep.subr.mxu0 0.0
    %398 = vmatpush1.msra.mxu0 0.0
    %399 = vmatprep.subr.mxu0 0.0
    %400 = vmatpush1.msra.mxu0 0.0
    %401 = vmatprep.subr.mxu0 0.0
    %402 = vmatpush1.msra.mxu0 0.0
    %403 = vmatprep.subr.mxu0 0.0
    %404 = vmatpush1.msra.mxu0 0.0
    %405 = vmatprep.subr.mxu0 0.0
    %406 = vmatpush1.msra.mxu0 0.0
    %407 = vmatprep.subr.mxu0 0.0
    %408 = vmatpush1.msra.mxu0 0.0
    %409 = vmatprep.subr.mxu0 0.0
    %410 = vmatpush1.msra.mxu0 0.0
    %411 = vmatprep.mubr.f32.mxu0 0.0
    %412 = vmatmul.mubr.f32.gmra.mrb[0].mxu0 %v336
    %v413 = vpop.f32.mrb[0].mxu0
    %v414 = vadd.f32 0.0, %v413
    %v415 = vpop.f32.mrb[0].mxu0
    %416 = vmatprep.mubr.f32.mxu0 0.0
    %417 = vmatmul.mubr.f32.gmra.mrb[0].mxu0 %v339
    %v418 = vpop.f32.mrb[0].mxu0
    %v419 = vadd.f32 0.0, %v418
    %v420 = vpop.f32.mrb[0].mxu0
    %421 = vmatprep.mubr.f32.mxu0 0.0
    %422 = vmatmul.mubr.f32.gmra.mrb[0].mxu0 %v342
    %v423 = vpop.f32.mrb[0].mxu0
    %v424 = vadd.f32 0.0, %v423
    %v425 = vpop.f32.mrb[0].mxu0
    %426 = vmatprep.mubr.f32.mxu0 0.0
    %427 = vmatmul.mubr.f32.gmra.mrb[0].mxu0 %v345
    %v428 = vpop.f32.mrb[0].mxu0
    %v429 = vadd.f32 0.0, %v428
    %v430 = vpop.f32.mrb[0].mxu0
    %431 = vdwg.mxu0
    %v432 = vld [vmem:[#allocation10] sm:$0xff]
    %v433 = vld [vmem:[#allocation10 + $0x8] sm:$0xff]
    %v434 = vld [vmem:[#allocation10 + $0x10] sm:$0xff]
    %v435 = vld [vmem:[#allocation10 + $0x18] sm:$0xff]
    %v436 = vld [vmem:[#allocation10 + $0x20] sm:$0xff]
    %v437 = vld [vmem:[#allocation10 + $0x28] sm:$0xff]
    %v438 = vld [vmem:[#allocation10 + $0x30] sm:$0xff]
    %v439 = vld [vmem:[#allocation10 + $0x38] sm:$0xff]
    %v440 = vld [vmem:[#allocation11] sm:$0xff]
    %v441 = vld [vmem:[#allocation11 + $0x8] sm:$0xff]
    %v442 = vld [vmem:[#allocation11 + $0x10] sm:$0xff]
    %v443 = vld [vmem:[#allocation11 + $0x18] sm:$0xff]
    %v444 = vld [vmem:[#allocation11 + $0x20] sm:$0xff]
    %v445 = vld [vmem:[#allocation11 + $0x28] sm:$0xff]
    %v446 = vld [vmem:[#allocation11 + $0x30] sm:$0xff]
    %v447 = vld [vmem:[#allocation11 + $0x38] sm:$0xff]
    %vm448 = vcmask 523264
    %v450 = vsel %vm448, %v225, 0
    %v453 = vsel %vm448, %v226, 0
    %v456 = vsel %vm448, %v227, 0
    %v459 = vsel %vm448, %v228, 0
    %461 = vmatprep.subr.mxu0 0.0
    %462 = vmatpush1.msra.mxu0 %v440
    %463 = vmatprep.subr.mxu0 0.0
    %464 = vmatpush1.msra.mxu0 %v441
    %465 = vmatprep.subr.mxu0 0.0
    %466 = vmatpush1.msra.mxu0 %v442
    %467 = vmatprep.subr.mxu0 0.0
    %468 = vmatpush1.msra.mxu0 %v443
    %469 = vmatprep.subr.mxu0 0.0
    %470 = vmatpush1.msra.mxu0 %v444
    %471 = vmatprep.subr.mxu0 0.0
    %472 = vmatpush1.msra.mxu0 %v445
    %473 = vmatprep.subr.mxu0 0.0
    %474 = vmatpush1.msra.mxu0 %v446
    %475 = vmatprep.subr.mxu0 0.0
    %476 = vmatpush1.msra.mxu0 %v447
    %477 = vmatprep.subr.mxu0 0.0
    %478 = vmatpush1.msra.mxu0 0.0
    %479 = vmatprep.subr.mxu0 0.0
    %480 = vmatpush1.msra.mxu0 0.0
    %481 = vmatprep.subr.mxu0 0.0
    %482 = vmatpush1.msra.mxu0 0.0
    %483 = vmatprep.subr.mxu0 0.0
    %484 = vmatpush1.msra.mxu0 0.0
    %485 = vmatprep.subr.mxu0 0.0
    %486 = vmatpush1.msra.mxu0 0.0
    %487 = vmatprep.subr.mxu0 0.0
    %488 = vmatpush1.msra.mxu0 0.0
    %489 = vmatprep.subr.mxu0 0.0
    %490 = vmatpush1.msra.mxu0 0.0
    %491 = vmatprep.subr.mxu0 0.0
    %492 = vmatpush1.msra.mxu0 0.0
    %493 = vmatprep.subr.mxu0 0.0
    %494 = vmatpush1.msra.mxu0 0.0
    %495 = vmatprep.subr.mxu0 0.0
    %496 = vmatpush1.msra.mxu0 0.0
    %497 = vmatprep.subr.mxu0 0.0
    %498 = vmatpush1.msra.mxu0 0.0
    %499 = vmatprep.subr.mxu0 0.0
    %500 = vmatpush1.msra.mxu0 0.0
    %501 = vmatprep.subr.mxu0 0.0
    %502 = vmatpush1.msra.mxu0 0.0
    %503 = vmatprep.subr.mxu0 0.0
    %504 = vmatpush1.msra.mxu0 0.0
    %505 = vmatprep.subr.mxu0 0.0
    %506 = vmatpush1.msra.mxu0 0.0
    %507 = vmatprep.subr.mxu0 0.0
    %508 = vmatpush1.msra.mxu0 0.0
    %509 = vmatprep.subr.mxu0 0.0
    %510 = vmatpush1.msra.mxu0 0.0
    %511 = vmatprep.subr.mxu0 0.0
    %512 = vmatpush1.msra.mxu0 0.0
    %513 = vmatprep.subr.mxu0 0.0
    %514 = vmatpush1.msra.mxu0 0.0
    %515 = vmatprep.subr.mxu0 0.0
    %516 = vmatpush1.msra.mxu0 0.0
    %517 = vmatprep.subr.mxu0 0.0
    %518 = vmatpush1.msra.mxu0 0.0
    %519 = vmatprep.subr.mxu0 0.0
    %520 = vmatpush1.msra.mxu0 0.0
    %521 = vmatprep.subr.mxu0 0.0
    %522 = vmatpush1.msra.mxu0 0.0
    %523 = vmatprep.subr.mxu0 0.0
    %524 = vmatpush1.msra.mxu0 0.0
    %525 = vmatprep.mubr.f32.mxu0 0.0
    %526 = vmatmul.mubr.f32.gmra.mrb[0].mxu0 %v450
    %v527 = vpop.f32.mrb[0].mxu0
    %v528 = vadd.f32 0.0, %v527
    %v529 = vpop.f32.mrb[0].mxu0
    %530 = vmatprep.mubr.f32.mxu0 0.0
    %531 = vmatmul.mubr.f32.gmra.mrb[0].mxu0 %v453
    %v532 = vpop.f32.mrb[0].mxu0
    %v533 = vadd.f32 0.0, %v532
    %v534 = vpop.f32.mrb[0].mxu0
    %535 = vmatprep.mubr.f32.mxu0 0.0
    %536 = vmatmul.mubr.f32.gmra.mrb[0].mxu0 %v456
    %v537 = vpop.f32.mrb[0].mxu0
    %v538 = vadd.f32 0.0, %v537
    %v539 = vpop.f32.mrb[0].mxu0
    %540 = vmatprep.mubr.f32.mxu0 0.0
    %541 = vmatmul.mubr.f32.gmra.mrb[0].mxu0 %v459
    %v542 = vpop.f32.mrb[0].mxu0
    %v543 = vadd.f32 0.0, %v542
    %v544 = vpop.f32.mrb[0].mxu0
    %545 = vdwg.mxu0
    %v547 = vsel %vm448, %v313, 0
    %v550 = vsel %vm448, %v318, 0
    %v553 = vsel %vm448, %v323, 0
    %v556 = vsel %vm448, %v328, 0
    %558 = vmatprep.subr.mxu0 0.0
    %559 = vmatpush1.msra.mxu0 %v432
    %560 = vmatprep.subr.mxu0 0.0
    %561 = vmatpush1.msra.mxu0 %v433
    %562 = vmatprep.subr.mxu0 0.0
    %563 = vmatpush1.msra.mxu0 %v434
    %564 = vmatprep.subr.mxu0 0.0
    %565 = vmatpush1.msra.mxu0 %v435
    %566 = vmatprep.subr.mxu0 0.0
    %567 = vmatpush1.msra.mxu0 %v436
    %568 = vmatprep.subr.mxu0 0.0
    %569 = vmatpush1.msra.mxu0 %v437
    %570 = vmatprep.subr.mxu0 0.0
    %571 = vmatpush1.msra.mxu0 %v438
    %572 = vmatprep.subr.mxu0 0.0
    %573 = vmatpush1.msra.mxu0 %v439
    %574 = vmatprep.subr.mxu0 0.0
    %575 = vmatpush1.msra.mxu0 0.0
    %576 = vmatprep.subr.mxu0 0.0
    %577 = vmatpush1.msra.mxu0 0.0
    %578 = vmatprep.subr.mxu0 0.0
    %579 = vmatpush1.msra.mxu0 0.0
    %580 = vmatprep.subr.mxu0 0.0
    %581 = vmatpush1.msra.mxu0 0.0
    %582 = vmatprep.subr.mxu0 0.0
    %583 = vmatpush1.msra.mxu0 0.0
    %584 = vmatprep.subr.mxu0 0.0
    %585 = vmatpush1.msra.mxu0 0.0
    %586 = vmatprep.subr.mxu0 0.0
    %587 = vmatpush1.msra.mxu0 0.0
    %588 = vmatprep.subr.mxu0 0.0
    %589 = vmatpush1.msra.mxu0 0.0
    %590 = vmatprep.subr.mxu0 0.0
    %591 = vmatpush1.msra.mxu0 0.0
    %592 = vmatprep.subr.mxu0 0.0
    %593 = vmatpush1.msra.mxu0 0.0
    %594 = vmatprep.subr.mxu0 0.0
    %595 = vmatpush1.msra.mxu0 0.0
    %596 = vmatprep.subr.mxu0 0.0
    %597 = vmatpush1.msra.mxu0 0.0
    %598 = vmatprep.subr.mxu0 0.0
    %599 = vmatpush1.msra.mxu0 0.0
    %600 = vmatprep.subr.mxu0 0.0
    %601 = vmatpush1.msra.mxu0 0.0
    %602 = vmatprep.subr.mxu0 0.0
    %603 = vmatpush1.msra.mxu0 0.0
    %604 = vmatprep.subr.mxu0 0.0
    %605 = vmatpush1.msra.mxu0 0.0
    %606 = vmatprep.subr.mxu0 0.0
    %607 = vmatpush1.msra.mxu0 0.0
    %608 = vmatprep.subr.mxu0 0.0
    %609 = vmatpush1.msra.mxu0 0.0
    %610 = vmatprep.subr.mxu0 0.0
    %611 = vmatpush1.msra.mxu0 0.0
    %612 = vmatprep.subr.mxu0 0.0
    %613 = vmatpush1.msra.mxu0 0.0
    %614 = vmatprep.subr.mxu0 0.0
    %615 = vmatpush1.msra.mxu0 0.0
    %616 = vmatprep.subr.mxu0 0.0
    %617 = vmatpush1.msra.mxu0 0.0
    %618 = vmatprep.subr.mxu0 0.0
    %619 = vmatpush1.msra.mxu0 0.0
    %620 = vmatprep.subr.mxu0 0.0
    %621 = vmatpush1.msra.mxu0 0.0
    %622 = vmatprep.mubr.f32.mxu0 0.0
    %623 = vmatmul.mubr.f32.gmra.mrb[0].mxu0 %v547
    %v624 = vpop.f32.mrb[0].mxu0
    %v625 = vadd.f32 %v528, %v624
    %v626 = vpop.f32.mrb[0].mxu0
    %627 = vmatprep.mubr.f32.mxu0 0.0
    %628 = vmatmul.mubr.f32.gmra.mrb[0].mxu0 %v550
    %v629 = vpop.f32.mrb[0].mxu0
    %v630 = vadd.f32 %v533, %v629
    %v631 = vpop.f32.mrb[0].mxu0
    %632 = vmatprep.mubr.f32.mxu0 0.0
    %633 = vmatmul.mubr.f32.gmra.mrb[0].mxu0 %v553
    %v634 = vpop.f32.mrb[0].mxu0
    %v635 = vadd.f32 %v538, %v634
    %v636 = vpop.f32.mrb[0].mxu0
    %637 = vmatprep.mubr.f32.mxu0 0.0
    %638 = vmatmul.mubr.f32.gmra.mrb[0].mxu0 %v556
    %v639 = vpop.f32.mrb[0].mxu0
    %v640 = vadd.f32 %v543, %v639
    %v641 = vpop.f32.mrb[0].mxu0
    %642 = vdwg.mxu0
    %v643 = vld [vmem:[#allocation13] sm:$0xff]
    %v644 = vld [vmem:[#allocation13 + $0x8] sm:$0xff]
    %v645 = vld [vmem:[#allocation13 + $0x10] sm:$0xff]
    %v646 = vld [vmem:[#allocation13 + $0x18] sm:$0xff]
    %v647 = vld [vmem:[#allocation13 + $0x20] sm:$0xff]
    %v648 = vld [vmem:[#allocation13 + $0x28] sm:$0xff]
    %v649 = vld [vmem:[#allocation13 + $0x30] sm:$0xff]
    %v650 = vld [vmem:[#allocation13 + $0x38] sm:$0xff]
    %v652 = vsel %vm448, %v414, 0
    %v655 = vsel %vm448, %v419, 0
    %v658 = vsel %vm448, %v424, 0
    %v661 = vsel %vm448, %v429, 0
    %663 = vmatprep.subr.mxu0 0.0
    %664 = vmatpush1.msra.mxu0 %v643
    %665 = vmatprep.subr.mxu0 0.0
    %666 = vmatpush1.msra.mxu0 %v644
    %667 = vmatprep.subr.mxu0 0.0
    %668 = vmatpush1.msra.mxu0 %v645
    %669 = vmatprep.subr.mxu0 0.0
    %670 = vmatpush1.msra.mxu0 %v646
    %671 = vmatprep.subr.mxu0 0.0
    %672 = vmatpush1.msra.mxu0 %v647
    %673 = vmatprep.subr.mxu0 0.0
    %674 = vmatpush1.msra.mxu0 %v648
    %675 = vmatprep.subr.mxu0 0.0
    %676 = vmatpush1.msra.mxu0 %v649
    %677 = vmatprep.subr.mxu0 0.0
    %678 = vmatpush1.msra.mxu0 %v650
    %679 = vmatprep.subr.mxu0 0.0
    %680 = vmatpush1.msra.mxu0 0.0
    %681 = vmatprep.subr.mxu0 0.0
    %682 = vmatpush1.msra.mxu0 0.0
    %683 = vmatprep.subr.mxu0 0.0
    %684 = vmatpush1.msra.mxu0 0.0
    %685 = vmatprep.subr.mxu0 0.0
    %686 = vmatpush1.msra.mxu0 0.0
    %687 = vmatprep.subr.mxu0 0.0
    %688 = vmatpush1.msra.mxu0 0.0
    %689 = vmatprep.subr.mxu0 0.0
    %690 = vmatpush1.msra.mxu0 0.0
    %691 = vmatprep.subr.mxu0 0.0
    %692 = vmatpush1.msra.mxu0 0.0
    %693 = vmatprep.subr.mxu0 0.0
    %694 = vmatpush1.msra.mxu0 0.0
    %695 = vmatprep.subr.mxu0 0.0
    %696 = vmatpush1.msra.mxu0 0.0
    %697 = vmatprep.subr.mxu0 0.0
    %698 = vmatpush1.msra.mxu0 0.0
    %699 = vmatprep.subr.mxu0 0.0
    %700 = vmatpush1.msra.mxu0 0.0
    %701 = vmatprep.subr.mxu0 0.0
    %702 = vmatpush1.msra.mxu0 0.0
    %703 = vmatprep.subr.mxu0 0.0
    %704 = vmatpush1.msra.mxu0 0.0
    %705 = vmatprep.subr.mxu0 0.0
    %706 = vmatpush1.msra.mxu0 0.0
    %707 = vmatprep.subr.mxu0 0.0
    %708 = vmatpush1.msra.mxu0 0.0
    %709 = vmatprep.subr.mxu0 0.0
    %710 = vmatpush1.msra.mxu0 0.0
    %711 = vmatprep.subr.mxu0 0.0
    %712 = vmatpush1.msra.mxu0 0.0
    %713 = vmatprep.subr.mxu0 0.0
    %714 = vmatpush1.msra.mxu0 0.0
    %715 = vmatprep.subr.mxu0 0.0
    %716 = vmatpush1.msra.mxu0 0.0
    %717 = vmatprep.subr.mxu0 0.0
    %718 = vmatpush1.msra.mxu0 0.0
    %719 = vmatprep.subr.mxu0 0.0
    %720 = vmatpush1.msra.mxu0 0.0
    %721 = vmatprep.subr.mxu0 0.0
    %722 = vmatpush1.msra.mxu0 0.0
    %723 = vmatprep.subr.mxu0 0.0
    %724 = vmatpush1.msra.mxu0 0.0
    %725 = vmatprep.subr.mxu0 0.0
    %726 = vmatpush1.msra.mxu0 0.0
    %727 = vmatprep.mubr.f32.mxu0 0.0
    %728 = vmatmul.mubr.f32.gmra.mrb[0].mxu0 %v652
    %v729 = vpop.f32.mrb[0].mxu0
    %v730 = vadd.f32 0.0, %v729
    %v731 = vpop.f32.mrb[0].mxu0
    %732 = vmatprep.mubr.f32.mxu0 0.0
    %733 = vmatmul.mubr.f32.gmra.mrb[0].mxu0 %v655
    %v734 = vpop.f32.mrb[0].mxu0
    %v735 = vadd.f32 0.0, %v734
    %v736 = vpop.f32.mrb[0].mxu0
    %737 = vmatprep.mubr.f32.mxu0 0.0
    %738 = vmatmul.mubr.f32.gmra.mrb[0].mxu0 %v658
    %v739 = vpop.f32.mrb[0].mxu0
    %v740 = vadd.f32 0.0, %v739
    %v741 = vpop.f32.mrb[0].mxu0
    %742 = vmatprep.mubr.f32.mxu0 0.0
    %743 = vmatmul.mubr.f32.gmra.mrb[0].mxu0 %v661
    %v744 = vpop.f32.mrb[0].mxu0
    %v745 = vadd.f32 0.0, %v744
    %v746 = vpop.f32.mrb[0].mxu0
    %747 = vdwg.mxu0
    %v748 = vadd.f32 %v625, %v730
    %v749 = vadd.f32 %v630, %v735
    %v750 = vadd.f32 %v635, %v740
    %v751 = vadd.f32 %v640, %v745
    %v752 = vld [vmem:[%s7] sm:$0x1]
    %v754 = vlaneseq
    %v755 = vshrl.u32 %v754, 7
    %v756 = vsub.s32 0, %v755
    %v757 = vrot.slane %v752, %v756
    %v759 = vadd.f32 %v748, %v757
    %v760 = vadd.f32 %v749, %v757
    %v761 = vadd.f32 %v750, %v757
    %v762 = vadd.f32 %v751, %v757
    %v763 = vld [vmem:[#allocation5] sm:$0xff]
    %v764 = vld [vmem:[#allocation5 + $0x8] sm:$0xff]
    %v765 = vld [vmem:[#allocation5 + $0x10] sm:$0xff]
    %v766 = vld [vmem:[#allocation5 + $0x18] sm:$0xff]
    %v767 = vadd.f32 %v759, %v763
    %v768 = vadd.f32 %v760, %v764
    %v769 = vadd.f32 %v761, %v765
    %v770 = vadd.f32 %v762, %v766
    %v771 = vxor.u32 %v767, 2147483648
    %v772 = vxor.u32 %v768, 2147483648
    %v773 = vxor.u32 %v769, 2147483648
    %v774 = vxor.u32 %v770, 2147483648
    %v775 = vmul.f32 %v771, 1.442695
    %v776 = vpow.pop %v775
    %v777 = vmul.f32 %v772, 1.442695
    %v778 = vpow.pop %v777
    %v779 = vmul.f32 %v773, 1.442695
    %v780 = vpow.pop %v779
    %v781 = vmul.f32 %v774, 1.442695
    %v782 = vpow.pop %v781
    %v783 = vadd.f32 %v776, 1.0
    %v784 = vadd.f32 %v778, 1.0
    %v785 = vadd.f32 %v780, 1.0
    %v786 = vadd.f32 %v782, 1.0
    %v787 = vrcp.pop %v783
    %v788 = vmul.f32 1.0, %v787
    %v789 = vrcp.pop %v784
    %v790 = vmul.f32 1.0, %v789
    %v791 = vrcp.pop %v785
    %v792 = vmul.f32 1.0, %v791
    %v793 = vrcp.pop %v786
    %v794 = vmul.f32 1.0, %v793
    %v795 = vmul.f32 %v767, %v788
    %v796 = vmul.f32 %v768, %v790
    %v797 = vmul.f32 %v769, %v792
    %v798 = vmul.f32 %v770, %v794
    %799 = vmatprep.subr.mxu0 0.0
    %800 = vmatpush1.msra.mxu0 %v795
    %801 = vmatprep.subr.mxu0 0.0
    %802 = vmatpush1.msra.mxu0 %v796
    %803 = vmatprep.subr.mxu0 0.0
    %804 = vmatpush1.msra.mxu0 %v797
    %805 = vmatprep.subr.mxu0 0.0
    %806 = vmatpush1.msra.mxu0 %v798
    %807 = vmatprep.subr.mxu0 0.0
    %808 = vmatpush1.msra.mxu0 0.0
    %809 = vmatprep.subr.mxu0 0.0
    %810 = vmatpush1.msra.mxu0 0.0
    %811 = vmatprep.subr.mxu0 0.0
    %812 = vmatpush1.msra.mxu0 0.0
    %813 = vmatprep.subr.mxu0 0.0
    %814 = vmatpush1.msra.mxu0 0.0
    %815 = vmatprep.subr.mxu0 0.0
    %816 = vmatpush1.msra.mxu0 0.0
    %817 = vmatprep.subr.mxu0 0.0
    %818 = vmatpush1.msra.mxu0 0.0
    %819 = vmatprep.subr.mxu0 0.0
    %820 = vmatpush1.msra.mxu0 0.0
    %821 = vmatprep.subr.mxu0 0.0
    %822 = vmatpush1.msra.mxu0 0.0
    %823 = vmatprep.subr.mxu0 0.0
    %824 = vmatpush1.msra.mxu0 0.0
    %825 = vmatprep.subr.mxu0 0.0
    %826 = vmatpush1.msra.mxu0 0.0
    %827 = vmatprep.subr.mxu0 0.0
    %828 = vmatpush1.msra.mxu0 0.0
    %829 = vmatprep.subr.mxu0 0.0
    %830 = vmatpush1.msra.mxu0 0.0
    %831 = vmatprep.subr.mxu0 0.0
    %832 = vmatpush1.msra.mxu0 0.0
    %833 = vmatprep.subr.mxu0 0.0
    %834 = vmatpush1.msra.mxu0 0.0
    %835 = vmatprep.subr.mxu0 0.0
    %836 = vmatpush1.msra.mxu0 0.0
    %837 = vmatprep.subr.mxu0 0.0
    %838 = vmatpush1.msra.mxu0 0.0
    %839 = vmatprep.subr.mxu0 0.0
    %840 = vmatpush1.msra.mxu0 0.0
    %841 = vmatprep.subr.mxu0 0.0
    %842 = vmatpush1.msra.mxu0 0.0
    %843 = vmatprep.subr.mxu0 0.0
    %844 = vmatpush1.msra.mxu0 0.0
    %845 = vmatprep.subr.mxu0 0.0
    %846 = vmatpush1.msra.mxu0 0.0
    %847 = vmatprep.subr.mxu0 0.0
    %848 = vmatpush1.msra.mxu0 0.0
    %849 = vmatprep.subr.mxu0 0.0
    %850 = vmatpush1.msra.mxu0 0.0
    %851 = vmatprep.subr.mxu0 0.0
    %852 = vmatpush1.msra.mxu0 0.0
    %853 = vmatprep.subr.mxu0 0.0
    %854 = vmatpush1.msra.mxu0 0.0
    %855 = vmatprep.subr.mxu0 0.0
    %856 = vmatpush1.msra.mxu0 0.0
    %857 = vmatprep.subr.mxu0 0.0
    %858 = vmatpush1.msra.mxu0 0.0
    %859 = vmatprep.subr.mxu0 0.0
    %860 = vmatpush1.msra.mxu0 0.0
    %861 = vmatprep.subr.mxu0 0.0
    %862 = vmatpush1.msra.mxu0 0.0
    %863 = vmatprep.mubr.f32.mxu0 0.0
    %864 = vmatmul.mubr.f32.gmra.mrb[0].mxu0 %v235
    %v865 = vpop.f32.mrb[0].mxu0
    %v866 = vadd.f32 0.0, %v865
    %v867 = vpop.f32.mrb[0].mxu0
    %868 = vmatprep.mubr.f32.mxu0 0.0
    %869 = vmatmul.mubr.f32.gmra.mrb[0].mxu0 %v238
    %v870 = vpop.f32.mrb[0].mxu0
    %v871 = vadd.f32 0.0, %v870
    %v872 = vpop.f32.mrb[0].mxu0
    %873 = vmatprep.mubr.f32.mxu0 0.0
    %874 = vmatmul.mubr.f32.gmra.mrb[0].mxu0 %v241
    %v875 = vpop.f32.mrb[0].mxu0
    %v876 = vadd.f32 0.0, %v875
    %v877 = vpop.f32.mrb[0].mxu0
    %878 = vmatprep.mubr.f32.mxu0 0.0
    %879 = vmatmul.mubr.f32.gmra.mrb[0].mxu0 %v244
    %v880 = vpop.f32.mrb[0].mxu0
    %v881 = vadd.f32 0.0, %v880
    %v882 = vpop.f32.mrb[0].mxu0
    %883 = vdwg.mxu0
    %884 = vmatprep.subr.mxu0 0.0
    %885 = vmatpush1.msra.mxu0 %v795
    %886 = vmatprep.subr.mxu0 0.0
    %887 = vmatpush1.msra.mxu0 %v796
    %888 = vmatprep.subr.mxu0 0.0
    %889 = vmatpush1.msra.mxu0 %v797
    %890 = vmatprep.subr.mxu0 0.0
    %891 = vmatpush1.msra.mxu0 %v798
    %892 = vmatprep.subr.mxu0 0.0
    %893 = vmatpush1.msra.mxu0 0.0
    %894 = vmatprep.subr.mxu0 0.0
    %895 = vmatpush1.msra.mxu0 0.0
    %896 = vmatprep.subr.mxu0 0.0
    %897 = vmatpush1.msra.mxu0 0.0
    %898 = vmatprep.subr.mxu0 0.0
    %899 = vmatpush1.msra.mxu0 0.0
    %900 = vmatprep.subr.mxu0 0.0
    %901 = vmatpush1.msra.mxu0 0.0
    %902 = vmatprep.subr.mxu0 0.0
    %903 = vmatpush1.msra.mxu0 0.0
    %904 = vmatprep.subr.mxu0 0.0
    %905 = vmatpush1.msra.mxu0 0.0
    %906 = vmatprep.subr.mxu0 0.0
    %907 = vmatpush1.msra.mxu0 0.0
    %908 = vmatprep.subr.mxu0 0.0
    %909 = vmatpush1.msra.mxu0 0.0
    %910 = vmatprep.subr.mxu0 0.0
    %911 = vmatpush1.msra.mxu0 0.0
    %912 = vmatprep.subr.mxu0 0.0
    %913 = vmatpush1.msra.mxu0 0.0
    %914 = vmatprep.subr.mxu0 0.0
    %915 = vmatpush1.msra.mxu0 0.0
    %916 = vmatprep.subr.mxu0 0.0
    %917 = vmatpush1.msra.mxu0 0.0
    %918 = vmatprep.subr.mxu0 0.0
    %919 = vmatpush1.msra.mxu0 0.0
    %920 = vmatprep.subr.mxu0 0.0
    %921 = vmatpush1.msra.mxu0 0.0
    %922 = vmatprep.subr.mxu0 0.0
    %923 = vmatpush1.msra.mxu0 0.0
    %924 = vmatprep.subr.mxu0 0.0
    %925 = vmatpush1.msra.mxu0 0.0
    %926 = vmatprep.subr.mxu0 0.0
    %927 = vmatpush1.msra.mxu0 0.0
    %928 = vmatprep.subr.mxu0 0.0
    %929 = vmatpush1.msra.mxu0 0.0
    %930 = vmatprep.subr.mxu0 0.0
    %931 = vmatpush1.msra.mxu0 0.0
    %932 = vmatprep.subr.mxu0 0.0
    %933 = vmatpush1.msra.mxu0 0.0
    %934 = vmatprep.subr.mxu0 0.0
    %935 = vmatpush1.msra.mxu0 0.0
    %936 = vmatprep.subr.mxu0 0.0
    %937 = vmatpush1.msra.mxu0 0.0
    %938 = vmatprep.subr.mxu0 0.0
    %939 = vmatpush1.msra.mxu0 0.0
    %940 = vmatprep.subr.mxu0 0.0
    %941 = vmatpush1.msra.mxu0 0.0
    %942 = vmatprep.subr.mxu0 0.0
    %943 = vmatpush1.msra.mxu0 0.0
    %944 = vmatprep.subr.mxu0 0.0
    %945 = vmatpush1.msra.mxu0 0.0
    %946 = vmatprep.subr.mxu0 0.0
    %947 = vmatpush1.msra.mxu0 0.0
    %948 = vmatprep.mubr.f32.mxu0 0.0
    %949 = vmatmul.mubr.f32.gmra.mrb[0].mxu0 %v336
    %v950 = vpop.f32.mrb[0].mxu0
    %v951 = vadd.f32 0.0, %v950
    %v952 = vpop.f32.mrb[0].mxu0
    %953 = vmatprep.mubr.f32.mxu0 0.0
    %954 = vmatmul.mubr.f32.gmra.mrb[0].mxu0 %v339
    %v955 = vpop.f32.mrb[0].mxu0
    %v956 = vadd.f32 0.0, %v955
    %v957 = vpop.f32.mrb[0].mxu0
    %958 = vmatprep.mubr.f32.mxu0 0.0
    %959 = vmatmul.mubr.f32.gmra.mrb[0].mxu0 %v342
    %v960 = vpop.f32.mrb[0].mxu0
    %v961 = vadd.f32 0.0, %v960
    %v962 = vpop.f32.mrb[0].mxu0
    %963 = vmatprep.mubr.f32.mxu0 0.0
    %964 = vmatmul.mubr.f32.gmra.mrb[0].mxu0 %v345
    %v965 = vpop.f32.mrb[0].mxu0
    %v966 = vadd.f32 0.0, %v965
    %v967 = vpop.f32.mrb[0].mxu0
    %968 = vdwg.mxu0
    %v969 = vld [vmem:[#allocation14] sm:$0xff]
    %v970 = vld [vmem:[#allocation14 + $0x8] sm:$0xff]
    %v971 = vld [vmem:[#allocation14 + $0x10] sm:$0xff]
    %v972 = vld [vmem:[#allocation14 + $0x18] sm:$0xff]
    %v973 = vld [vmem:[#allocation14 + $0x20] sm:$0xff]
    %v974 = vld [vmem:[#allocation14 + $0x28] sm:$0xff]
    %v975 = vld [vmem:[#allocation14 + $0x30] sm:$0xff]
    %v976 = vld [vmem:[#allocation14 + $0x38] sm:$0xff]
    %v977 = vld [vmem:[#allocation14 + $0x40] sm:$0xff]
    %v978 = vld [vmem:[#allocation14 + $0x48] sm:$0xff]
    %v979 = vld [vmem:[#allocation14 + $0x50] sm:$0xff]
    %v980 = vld [vmem:[#allocation14 + $0x58] sm:$0xff]
    %v981 = vld [vmem:[#allocation14 + $0x60] sm:$0xff]
    %v982 = vld [vmem:[#allocation14 + $0x68] sm:$0xff]
    %v983 = vld [vmem:[#allocation14 + $0x70] sm:$0xff]
    %v984 = vld [vmem:[#allocation14 + $0x78] sm:$0xff]
    %v985 = vld [vmem:[#allocation16] sm:$0xff]
    %v986 = vld [vmem:[#allocation16 + $0x8] sm:$0xff]
    %v987 = vld [vmem:[#allocation16 + $0x10] sm:$0xff]
    %v988 = vld [vmem:[#allocation16 + $0x18] sm:$0xff]
    %v989 = vld [vmem:[#allocation16 + $0x20] sm:$0xff]
    %v990 = vld [vmem:[#allocation16 + $0x28] sm:$0xff]
    %v991 = vld [vmem:[#allocation16 + $0x30] sm:$0xff]
    %v992 = vld [vmem:[#allocation16 + $0x38] sm:$0xff]
    %v993 = vld [vmem:[#allocation16 + $0x40] sm:$0xff]
    %v994 = vld [vmem:[#allocation16 + $0x48] sm:$0xff]
    %v995 = vld [vmem:[#allocation16 + $0x50] sm:$0xff]
    %v996 = vld [vmem:[#allocation16 + $0x58] sm:$0xff]
    %v997 = vld [vmem:[#allocation16 + $0x60] sm:$0xff]
    %v998 = vld [vmem:[#allocation16 + $0x68] sm:$0xff]
    %v999 = vld [vmem:[#allocation16 + $0x70] sm:$0xff]
    %v1000 = vld [vmem:[#allocation16 + $0x78] sm:$0xff]
    %1001 = vmatprep.subr.mxu0 0.0
    %1002 = vmatpush1.msra.mxu0 %v985
    %1003 = vmatprep.subr.mxu0 0.0
    %1004 = vmatpush1.msra.mxu0 %v986
    %1005 = vmatprep.subr.mxu0 0.0
    %1006 = vmatpush1.msra.mxu0 %v987
    %1007 = vmatprep.subr.mxu0 0.0
    %1008 = vmatpush1.msra.mxu0 %v988
    %1009 = vmatprep.subr.mxu0 0.0
    %1010 = vmatpush1.msra.mxu0 %v989
    %1011 = vmatprep.subr.mxu0 0.0
    %1012 = vmatpush1.msra.mxu0 %v990
    %1013 = vmatprep.subr.mxu0 0.0
    %1014 = vmatpush1.msra.mxu0 %v991
    %1015 = vmatprep.subr.mxu0 0.0
    %1016 = vmatpush1.msra.mxu0 %v992
    %1017 = vmatprep.subr.mxu0 0.0
    %1018 = vmatpush1.msra.mxu0 %v993
    %1019 = vmatprep.subr.mxu0 0.0
    %1020 = vmatpush1.msra.mxu0 %v994
    %1021 = vmatprep.subr.mxu0 0.0
    %1022 = vmatpush1.msra.mxu0 %v995
    %1023 = vmatprep.subr.mxu0 0.0
    %1024 = vmatpush1.msra.mxu0 %v996
    %1025 = vmatprep.subr.mxu0 0.0
    %1026 = vmatpush1.msra.mxu0 %v997
    %1027 = vmatprep.subr.mxu0 0.0
    %1028 = vmatpush1.msra.mxu0 %v998
    %1029 = vmatprep.subr.mxu0 0.0
    %1030 = vmatpush1.msra.mxu0 %v999
    %1031 = vmatprep.subr.mxu0 0.0
    %1032 = vmatpush1.msra.mxu0 %v1000
    %1033 = vmatprep.subr.mxu0 0.0
    %1034 = vmatpush1.msra.mxu0 0.0
    %1035 = vmatprep.subr.mxu0 0.0
    %1036 = vmatpush1.msra.mxu0 0.0
    %1037 = vmatprep.subr.mxu0 0.0
    %1038 = vmatpush1.msra.mxu0 0.0
    %1039 = vmatprep.subr.mxu0 0.0
    %1040 = vmatpush1.msra.mxu0 0.0
    %1041 = vmatprep.subr.mxu0 0.0
    %1042 = vmatpush1.msra.mxu0 0.0
    %1043 = vmatprep.subr.mxu0 0.0
    %1044 = vmatpush1.msra.mxu0 0.0
    %1045 = vmatprep.subr.mxu0 0.0
    %1046 = vmatpush1.msra.mxu0 0.0
    %1047 = vmatprep.subr.mxu0 0.0
    %1048 = vmatpush1.msra.mxu0 0.0
    %1049 = vmatprep.subr.mxu0 0.0
    %1050 = vmatpush1.msra.mxu0 0.0
    %1051 = vmatprep.subr.mxu0 0.0
    %1052 = vmatpush1.msra.mxu0 0.0
    %1053 = vmatprep.subr.mxu0 0.0
    %1054 = vmatpush1.msra.mxu0 0.0
    %1055 = vmatprep.subr.mxu0 0.0
    %1056 = vmatpush1.msra.mxu0 0.0
    %1057 = vmatprep.subr.mxu0 0.0
    %1058 = vmatpush1.msra.mxu0 0.0
    %1059 = vmatprep.subr.mxu0 0.0
    %1060 = vmatpush1.msra.mxu0 0.0
    %1061 = vmatprep.subr.mxu0 0.0
    %1062 = vmatpush1.msra.mxu0 0.0
    %1063 = vmatprep.subr.mxu0 0.0
    %1064 = vmatpush1.msra.mxu0 0.0
    %1065 = vmatprep.mubr.f32.mxu0 0.0
    %1066 = vmatmul.mubr.f32.gmra.mrb[0].mxu0 %v795
    %v1067 = vpop.f32.mrb[0].mxu0
    %v1068 = vadd.f32 0.0, %v1067
    %v1069 = vpop.f32.mrb[0].mxu0
    %1070 = vmatprep.mubr.f32.mxu0 0.0
    %1071 = vmatmul.mubr.f32.gmra.mrb[0].mxu0 %v796
    %v1072 = vpop.f32.mrb[0].mxu0
    %v1073 = vadd.f32 0.0, %v1072
    %v1074 = vpop.f32.mrb[0].mxu0
    %1075 = vmatprep.mubr.f32.mxu0 0.0
    %1076 = vmatmul.mubr.f32.gmra.mrb[0].mxu0 %v797
    %v1077 = vpop.f32.mrb[0].mxu0
    %v1078 = vadd.f32 0.0, %v1077
    %v1079 = vpop.f32.mrb[0].mxu0
    %1080 = vmatprep.mubr.f32.mxu0 0.0
    %1081 = vmatmul.mubr.f32.gmra.mrb[0].mxu0 %v798
    %v1082 = vpop.f32.mrb[0].mxu0
    %v1083 = vadd.f32 0.0, %v1082
    %v1084 = vpop.f32.mrb[0].mxu0
    %1085 = vdwg.mxu0
    %1086 = vmatprep.subr.mxu0 0.0
    %1087 = vmatpush1.msra.mxu0 %v969
    %1088 = vmatprep.subr.mxu0 0.0
    %1089 = vmatpush1.msra.mxu0 %v970
    %1090 = vmatprep.subr.mxu0 0.0
    %1091 = vmatpush1.msra.mxu0 %v971
    %1092 = vmatprep.subr.mxu0 0.0
    %1093 = vmatpush1.msra.mxu0 %v972
    %1094 = vmatprep.subr.mxu0 0.0
    %1095 = vmatpush1.msra.mxu0 %v973
    %1096 = vmatprep.subr.mxu0 0.0
    %1097 = vmatpush1.msra.mxu0 %v974
    %1098 = vmatprep.subr.mxu0 0.0
    %1099 = vmatpush1.msra.mxu0 %v975
    %1100 = vmatprep.subr.mxu0 0.0
    %1101 = vmatpush1.msra.mxu0 %v976
    %1102 = vmatprep.subr.mxu0 0.0
    %1103 = vmatpush1.msra.mxu0 %v977
    %1104 = vmatprep.subr.mxu0 0.0
    %1105 = vmatpush1.msra.mxu0 %v978
    %1106 = vmatprep.subr.mxu0 0.0
    %1107 = vmatpush1.msra.mxu0 %v979
    %1108 = vmatprep.subr.mxu0 0.0
    %1109 = vmatpush1.msra.mxu0 %v980
    %1110 = vmatprep.subr.mxu0 0.0
    %1111 = vmatpush1.msra.mxu0 %v981
    %1112 = vmatprep.subr.mxu0 0.0
    %1113 = vmatpush1.msra.mxu0 %v982
    %1114 = vmatprep.subr.mxu0 0.0
    %1115 = vmatpush1.msra.mxu0 %v983
    %1116 = vmatprep.subr.mxu0 0.0
    %1117 = vmatpush1.msra.mxu0 %v984
    %1118 = vmatprep.subr.mxu0 0.0
    %1119 = vmatpush1.msra.mxu0 0.0
    %1120 = vmatprep.subr.mxu0 0.0
    %1121 = vmatpush1.msra.mxu0 0.0
    %1122 = vmatprep.subr.mxu0 0.0
    %1123 = vmatpush1.msra.mxu0 0.0
    %1124 = vmatprep.subr.mxu0 0.0
    %1125 = vmatpush1.msra.mxu0 0.0
    %1126 = vmatprep.subr.mxu0 0.0
    %1127 = vmatpush1.msra.mxu0 0.0
    %1128 = vmatprep.subr.mxu0 0.0
    %1129 = vmatpush1.msra.mxu0 0.0
    %1130 = vmatprep.subr.mxu0 0.0
    %1131 = vmatpush1.msra.mxu0 0.0
    %1132 = vmatprep.subr.mxu0 0.0
    %1133 = vmatpush1.msra.mxu0 0.0
    %1134 = vmatprep.subr.mxu0 0.0
    %1135 = vmatpush1.msra.mxu0 0.0
    %1136 = vmatprep.subr.mxu0 0.0
    %1137 = vmatpush1.msra.mxu0 0.0
    %1138 = vmatprep.subr.mxu0 0.0
    %1139 = vmatpush1.msra.mxu0 0.0
    %1140 = vmatprep.subr.mxu0 0.0
    %1141 = vmatpush1.msra.mxu0 0.0
    %1142 = vmatprep.subr.mxu0 0.0
    %1143 = vmatpush1.msra.mxu0 0.0
    %1144 = vmatprep.subr.mxu0 0.0
    %1145 = vmatpush1.msra.mxu0 0.0
    %1146 = vmatprep.subr.mxu0 0.0
    %1147 = vmatpush1.msra.mxu0 0.0
    %1148 = vmatprep.subr.mxu0 0.0
    %1149 = vmatpush1.msra.mxu0 0.0
    %1150 = vmatprep.mubr.f32.mxu0 0.0
    %1151 = vmatmul.mubr.f32.gmra.mrb[0].mxu0 %v866
    %v1152 = vpop.f32.mrb[0].mxu0
    %v1153 = vadd.f32 %v1068, %v1152
    %v1154 = vpop.f32.mrb[0].mxu0
    %1155 = vmatprep.mubr.f32.mxu0 0.0
    %1156 = vmatmul.mubr.f32.gmra.mrb[0].mxu0 %v871
    %v1157 = vpop.f32.mrb[0].mxu0
    %v1158 = vadd.f32 %v1073, %v1157
    %v1159 = vpop.f32.mrb[0].mxu0
    %1160 = vmatprep.mubr.f32.mxu0 0.0
    %1161 = vmatmul.mubr.f32.gmra.mrb[0].mxu0 %v876
    %v1162 = vpop.f32.mrb[0].mxu0
    %v1163 = vadd.f32 %v1078, %v1162
    %v1164 = vpop.f32.mrb[0].mxu0
    %1165 = vmatprep.mubr.f32.mxu0 0.0
    %1166 = vmatmul.mubr.f32.gmra.mrb[0].mxu0 %v881
    %v1167 = vpop.f32.mrb[0].mxu0
    %v1168 = vadd.f32 %v1083, %v1167
    %v1169 = vpop.f32.mrb[0].mxu0
    %1170 = vdwg.mxu0
    %v1171 = vld [vmem:[#allocation17] sm:$0xff]
    %v1172 = vld [vmem:[#allocation17 + $0x8] sm:$0xff]
    %v1173 = vld [vmem:[#allocation17 + $0x10] sm:$0xff]
    %v1174 = vld [vmem:[#allocation17 + $0x18] sm:$0xff]
    %v1175 = vld [vmem:[#allocation17 + $0x20] sm:$0xff]
    %v1176 = vld [vmem:[#allocation17 + $0x28] sm:$0xff]
    %v1177 = vld [vmem:[#allocation17 + $0x30] sm:$0xff]
    %v1178 = vld [vmem:[#allocation17 + $0x38] sm:$0xff]
    %v1179 = vld [vmem:[#allocation17 + $0x40] sm:$0xff]
    %v1180 = vld [vmem:[#allocation17 + $0x48] sm:$0xff]
    %v1181 = vld [vmem:[#allocation17 + $0x50] sm:$0xff]
    %v1182 = vld [vmem:[#allocation17 + $0x58] sm:$0xff]
    %v1183 = vld [vmem:[#allocation17 + $0x60] sm:$0xff]
    %v1184 = vld [vmem:[#allocation17 + $0x68] sm:$0xff]
    %v1185 = vld [vmem:[#allocation17 + $0x70] sm:$0xff]
    %v1186 = vld [vmem:[#allocation17 + $0x78] sm:$0xff]
    %1187 = vmatprep.subr.mxu0 0.0
    %1188 = vmatpush1.msra.mxu0 %v1171
    %1189 = vmatprep.subr.mxu0 0.0
    %1190 = vmatpush1.msra.mxu0 %v1172
    %1191 = vmatprep.subr.mxu0 0.0
    %1192 = vmatpush1.msra.mxu0 %v1173
    %1193 = vmatprep.subr.mxu0 0.0
    %1194 = vmatpush1.msra.mxu0 %v1174
    %1195 = vmatprep.subr.mxu0 0.0
    %1196 = vmatpush1.msra.mxu0 %v1175
    %1197 = vmatprep.subr.mxu0 0.0
    %1198 = vmatpush1.msra.mxu0 %v1176
    %1199 = vmatprep.subr.mxu0 0.0
    %1200 = vmatpush1.msra.mxu0 %v1177
    %1201 = vmatprep.subr.mxu0 0.0
    %1202 = vmatpush1.msra.mxu0 %v1178
    %1203 = vmatprep.subr.mxu0 0.0
    %1204 = vmatpush1.msra.mxu0 %v1179
    %1205 = vmatprep.subr.mxu0 0.0
    %1206 = vmatpush1.msra.mxu0 %v1180
    %1207 = vmatprep.subr.mxu0 0.0
    %1208 = vmatpush1.msra.mxu0 %v1181
    %1209 = vmatprep.subr.mxu0 0.0
    %1210 = vmatpush1.msra.mxu0 %v1182
    %1211 = vmatprep.subr.mxu0 0.0
    %1212 = vmatpush1.msra.mxu0 %v1183
    %1213 = vmatprep.subr.mxu0 0.0
    %1214 = vmatpush1.msra.mxu0 %v1184
    %1215 = vmatprep.subr.mxu0 0.0
    %1216 = vmatpush1.msra.mxu0 %v1185
    %1217 = vmatprep.subr.mxu0 0.0
    %1218 = vmatpush1.msra.mxu0 %v1186
    %1219 = vmatprep.subr.mxu0 0.0
    %1220 = vmatpush1.msra.mxu0 0.0
    %1221 = vmatprep.subr.mxu0 0.0
    %1222 = vmatpush1.msra.mxu0 0.0
    %1223 = vmatprep.subr.mxu0 0.0
    %1224 = vmatpush1.msra.mxu0 0.0
    %1225 = vmatprep.subr.mxu0 0.0
    %1226 = vmatpush1.msra.mxu0 0.0
    %1227 = vmatprep.subr.mxu0 0.0
    %1228 = vmatpush1.msra.mxu0 0.0
    %1229 = vmatprep.subr.mxu0 0.0
    %1230 = vmatpush1.msra.mxu0 0.0
    %1231 = vmatprep.subr.mxu0 0.0
    %1232 = vmatpush1.msra.mxu0 0.0
    %1233 = vmatprep.subr.mxu0 0.0
    %1234 = vmatpush1.msra.mxu0 0.0
    %1235 = vmatprep.subr.mxu0 0.0
    %1236 = vmatpush1.msra.mxu0 0.0
    %1237 = vmatprep.subr.mxu0 0.0
    %1238 = vmatpush1.msra.mxu0 0.0
    %1239 = vmatprep.subr.mxu0 0.0
    %1240 = vmatpush1.msra.mxu0 0.0
    %1241 = vmatprep.subr.mxu0 0.0
    %1242 = vmatpush1.msra.mxu0 0.0
    %1243 = vmatprep.subr.mxu0 0.0
    %1244 = vmatpush1.msra.mxu0 0.0
    %1245 = vmatprep.subr.mxu0 0.0
    %1246 = vmatpush1.msra.mxu0 0.0
    %1247 = vmatprep.subr.mxu0 0.0
    %1248 = vmatpush1.msra.mxu0 0.0
    %1249 = vmatprep.subr.mxu0 0.0
    %1250 = vmatpush1.msra.mxu0 0.0
    %1251 = vmatprep.mubr.f32.mxu0 0.0
    %1252 = vmatmul.mubr.f32.gmra.mrb[0].mxu0 %v951
    %v1253 = vpop.f32.mrb[0].mxu0
    %v1254 = vadd.f32 0.0, %v1253
    %v1255 = vpop.f32.mrb[0].mxu0
    %1256 = vmatprep.mubr.f32.mxu0 0.0
    %1257 = vmatmul.mubr.f32.gmra.mrb[0].mxu0 %v956
    %v1258 = vpop.f32.mrb[0].mxu0
    %v1259 = vadd.f32 0.0, %v1258
    %v1260 = vpop.f32.mrb[0].mxu0
    %1261 = vmatprep.mubr.f32.mxu0 0.0
    %1262 = vmatmul.mubr.f32.gmra.mrb[0].mxu0 %v961
    %v1263 = vpop.f32.mrb[0].mxu0
    %v1264 = vadd.f32 0.0, %v1263
    %v1265 = vpop.f32.mrb[0].mxu0
    %1266 = vmatprep.mubr.f32.mxu0 0.0
    %1267 = vmatmul.mubr.f32.gmra.mrb[0].mxu0 %v966
    %v1268 = vpop.f32.mrb[0].mxu0
    %v1269 = vadd.f32 0.0, %v1268
    %v1270 = vpop.f32.mrb[0].mxu0
    %1271 = vdwg.mxu0
    %v1272 = vadd.f32 %v1153, %v1254
    %v1273 = vadd.f32 %v1158, %v1259
    %v1274 = vadd.f32 %v1163, %v1264
    %v1275 = vadd.f32 %v1168, %v1269
    %v1276 = vld [vmem:[%s11] sm:$0x1]
    %v1278 = vlaneseq
    %v1279 = vshrl.u32 %v1278, 7
    %v1280 = vsub.s32 0, %v1279
    %v1281 = vrot.slane %v1276, %v1280
    %v1283 = vadd.f32 %v1272, %v1281
    %v1284 = vadd.f32 %v1273, %v1281
    %v1285 = vadd.f32 %v1274, %v1281
    %v1286 = vadd.f32 %v1275, %v1281
    %v1287 = vld [vmem:[#allocation19] sm:$0xff]
    %v1288 = vld [vmem:[#allocation19 + $0x8] sm:$0xff]
    %v1289 = vld [vmem:[#allocation19 + $0x10] sm:$0xff]
    %v1290 = vld [vmem:[#allocation19 + $0x18] sm:$0xff]
    %v1291 = vld [vmem:[#allocation19 + $0x20] sm:$0xff]
    %v1292 = vld [vmem:[#allocation19 + $0x28] sm:$0xff]
    %v1293 = vld [vmem:[#allocation19 + $0x30] sm:$0xff]
    %v1294 = vld [vmem:[#allocation19 + $0x38] sm:$0xff]
    %v1295 = vld [vmem:[%s13] sm:$0x1]
    %v1297 = vlaneseq
    %v1298 = vshrl.u32 %v1297, 7
    %v1299 = vsub.s32 0, %v1298
    %v1300 = vrot.slane %v1295, %v1299
    %v1303 = vsel %vm448, %v197, 0
    %v1306 = vsel %vm448, %v198, 0
    %v1309 = vsel %vm448, %v199, 0
    %v1312 = vsel %vm448, %v200, 0
    %1314 = vmatprep.subr.mxu0 0.0
    %1315 = vmatpush1.msra.mxu0 %v1287
    %1316 = vmatprep.subr.mxu0 0.0
    %1317 = vmatpush1.msra.mxu0 %v1288
    %1318 = vmatprep.subr.mxu0 0.0
    %1319 = vmatpush1.msra.mxu0 %v1289
    %1320 = vmatprep.subr.mxu0 0.0
    %1321 = vmatpush1.msra.mxu0 %v1290
    %1322 = vmatprep.subr.mxu0 0.0
    %1323 = vmatpush1.msra.mxu0 %v1291
    %1324 = vmatprep.subr.mxu0 0.0
    %1325 = vmatpush1.msra.mxu0 %v1292
    %1326 = vmatprep.subr.mxu0 0.0
    %1327 = vmatpush1.msra.mxu0 %v1293
    %1328 = vmatprep.subr.mxu0 0.0
    %1329 = vmatpush1.msra.mxu0 %v1294
    %1330 = vmatprep.subr.mxu0 0.0
    %1331 = vmatpush1.msra.mxu0 0.0
    %1332 = vmatprep.subr.mxu0 0.0
    %1333 = vmatpush1.msra.mxu0 0.0
    %1334 = vmatprep.subr.mxu0 0.0
    %1335 = vmatpush1.msra.mxu0 0.0
    %1336 = vmatprep.subr.mxu0 0.0
    %1337 = vmatpush1.msra.mxu0 0.0
    %1338 = vmatprep.subr.mxu0 0.0
    %1339 = vmatpush1.msra.mxu0 0.0
    %1340 = vmatprep.subr.mxu0 0.0
    %1341 = vmatpush1.msra.mxu0 0.0
    %1342 = vmatprep.subr.mxu0 0.0
    %1343 = vmatpush1.msra.mxu0 0.0
    %1344 = vmatprep.subr.mxu0 0.0
    %1345 = vmatpush1.msra.mxu0 0.0
    %1346 = vmatprep.subr.mxu0 0.0
    %1347 = vmatpush1.msra.mxu0 0.0
    %1348 = vmatprep.subr.mxu0 0.0
    %1349 = vmatpush1.msra.mxu0 0.0
    %1350 = vmatprep.subr.mxu0 0.0
    %1351 = vmatpush1.msra.mxu0 0.0
    %1352 = vmatprep.subr.mxu0 0.0
    %1353 = vmatpush1.msra.mxu0 0.0
    %1354 = vmatprep.subr.mxu0 0.0
    %1355 = vmatpush1.msra.mxu0 0.0
    %1356 = vmatprep.subr.mxu0 0.0
    %1357 = vmatpush1.msra.mxu0 0.0
    %1358 = vmatprep.subr.mxu0 0.0
    %1359 = vmatpush1.msra.mxu0 0.0
    %1360 = vmatprep.subr.mxu0 0.0
    %1361 = vmatpush1.msra.mxu0 0.0
    %1362 = vmatprep.subr.mxu0 0.0
    %1363 = vmatpush1.msra.mxu0 0.0
    %1364 = vmatprep.subr.mxu0 0.0
    %1365 = vmatpush1.msra.mxu0 0.0
    %1366 = vmatprep.subr.mxu0 0.0
    %1367 = vmatpush1.msra.mxu0 0.0
    %1368 = vmatprep.subr.mxu0 0.0
    %1369 = vmatpush1.msra.mxu0 0.0
    %1370 = vmatprep.subr.mxu0 0.0
    %1371 = vmatpush1.msra.mxu0 0.0
    %1372 = vmatprep.subr.mxu0 0.0
    %1373 = vmatpush1.msra.mxu0 0.0
    %1374 = vmatprep.subr.mxu0 0.0
    %1375 = vmatpush1.msra.mxu0 0.0
    %1376 = vmatprep.subr.mxu0 0.0
    %1377 = vmatpush1.msra.mxu0 0.0
    %1378 = vmatprep.mubr.f32.mxu0 0.0
    %1379 = vmatmul.mubr.f32.gmra.mrb[0].mxu0 %v1303
    %v1380 = vpop.f32.mrb[0].mxu0
    %v1381 = vadd.f32 %v1300, %v1380
    %v1382 = vpop.f32.mrb[0].mxu0
    %1383 = vmatprep.mubr.f32.mxu0 0.0
    %1384 = vmatmul.mubr.f32.gmra.mrb[0].mxu0 %v1306
    %v1385 = vpop.f32.mrb[0].mxu0
    %v1386 = vadd.f32 %v1300, %v1385
    %v1387 = vpop.f32.mrb[0].mxu0
    %1388 = vmatprep.mubr.f32.mxu0 0.0
    %1389 = vmatmul.mubr.f32.gmra.mrb[0].mxu0 %v1309
    %v1390 = vpop.f32.mrb[0].mxu0
    %v1391 = vadd.f32 %v1300, %v1390
    %v1392 = vpop.f32.mrb[0].mxu0
    %1393 = vmatprep.mubr.f32.mxu0 0.0
    %1394 = vmatmul.mubr.f32.gmra.mrb[0].mxu0 %v1312
    %v1395 = vpop.f32.mrb[0].mxu0
    %v1396 = vadd.f32 %v1300, %v1395
    %v1397 = vpop.f32.mrb[0].mxu0
    %1398 = vdwg.mxu0
    %v1399 = vadd.f32 %v1283, %v1381
    %v1400 = vadd.f32 %v1284, %v1386
    %v1401 = vadd.f32 %v1285, %v1391
    %v1402 = vadd.f32 %v1286, %v1396
    %1403 = vst [vmem:[#allocation20] sm:$0xff] %v1399
    %1404 = vst [vmem:[#allocation20 + $0x8] sm:$0xff] %v1400
    %1405 = vst [vmem:[#allocation20 + $0x10] sm:$0xff] %v1401
    %1406 = vst [vmem:[#allocation20 + $0x18] sm:$0xff] %v1402
    // Predicated region
    $region102: #{tpu_custom_call.1} parent=1 // pred_check
      _
    $region103: #{tpu_custom_call.1} parent=1 // pred_check_branch
      %1408 = sbr.rel (0) target = $region105
    $region104: #{tpu_custom_call.1} parent=1 // pred_region
      %s1410 = ssub.s32 512, 512
      %1411 = vsyncadd [#allocation4], %s1410
      %s1412 = sshll.u32 [#allocation20], 4
      %s1413 = int_to_ptr.vmem [resolvable:$true] %s1412
      %1418 = dma.vmem_to_hbm [thread:$0]  %s1413, 512, %s14, [#allocation4], 128, 128, 8
    $region105: #{tpu_custom_call.1} parent=1 // pred_fallthru
      _
    // Predicated region
    $region106: #{tpu_custom_call.1} parent=1 // pred_check
      _
    $region107: #{tpu_custom_call.1} parent=1 // pred_check_branch
      %1420 = sbr.rel (0) target = $region109
    $region108: #{tpu_custom_call.1} parent=1 // pred_region
      %1421 = dma.done [#allocation4], 512
    $region109: #{tpu_custom_call.1} parent=1 // pred_fallthru
      _
    %1422 = vsyncpa [#allocation3], 1
    %1423 = vsyncpa [#allocation6], 1
    %1424 = vsyncpa [#allocation9], 1
    %1425 = vsyncpa [#allocation12], 1
    %1426 = vsyncpa [#allocation15], 1
    %1427 = vsyncpa [#allocation18], 1
    %1428 = vsyncpa [#allocation4], 1

</llo_original>
